<compile_context>
chip_gen: v7x
topology: tpu7x:2x2x1
jax: 0.10.0
libtpu: 0.0.40
codegen_flags: <defaults>
</compile_context>

<pallas_src>
import functools

import jax
import jax.numpy as jnp
from jax.experimental import pallas as pl
from jax.experimental.pallas import tpu as pltpu


# ----------------------------------------------------------------------------
# args_parser() stand-in: deterministic loss weights (no argparse / no files).
# TODO(synk): real values come from args_parser(); these are synthetic defaults.
LAMBDA0 = 1.0    # self.args.lambda0 (weight on segmentation CE)
LAMBDA1 = 0.01   # self.loss_pca_weight
LAMBDA2 = 0.001  # self.loss_pcd_weight

_N_SPLIT = 2     # leading "parallel" grid axis (one block per TC on v7x)


def _tpu_defaults():
    """Generation-specific knobs: (max tile_h, vmem limit, contrast tile)."""
    kind = ""
    try:
        kind = jax.devices()[0].device_kind.lower()
    except Exception:
        pass
    if "v7" in kind:                    # 64 MiB VMEM per TensorCore
        return 256, 44 * 1024 * 1024, 8192
    if "v6" in kind:                    # 128 MiB VMEM
        return 256, 80 * 1024 * 1024, 8192
    if "v5 lite" in kind or "v5e" in kind or "v5litepod" in kind:
        return 128, 64 * 1024 * 1024, 4096
    return 128, 32 * 1024 * 1024, 4096  # conservative fallback


_MAX_TILE_H, _VMEM_LIMIT, _MAX_CONTRAST_TILE = _tpu_defaults()


def _round_up(x: int, m: int) -> int:
    return ((x + m - 1) // m) * m


def _interp_matrix(out_size: int, in_size: int) -> jnp.ndarray:
    """1-D interpolation matrix (out_size, in_size), align_corners=True."""
    if out_size == 1:
        src = jnp.zeros((1,), jnp.float32)
    else:
        src = jnp.arange(out_size, dtype=jnp.float32) * (
            (in_size - 1) / (out_size - 1))
    i0 = jnp.clip(jnp.floor(src).astype(jnp.int32), 0, in_size - 1)
    i1 = jnp.clip(i0 + 1, 0, in_size - 1)
    w1 = src - i0.astype(jnp.float32)
    w0 = 1.0 - w1
    cols = jnp.arange(in_size, dtype=jnp.int32)[None, :]
    m = (w0[:, None] * (cols == i0[:, None]).astype(jnp.float32)
         + w1[:, None] * (cols == i1[:, None]).astype(jnp.float32))
    return m.astype(jnp.float32)


# ----------------------------------------------------------------------------
# Kernel 1: contrast-branch CE (PAAC) + squared-gather (PCD).
#   Row-major (TILE_M, K) blocks are streamed from HBM; each CHUNK of pixels
#   is transposed to class-major (K, CHUNK) on the MXU (identity matmul), so
#   all softmax math is lane-dense over pixels with a short sublane reduction
#   over classes.  Partial sums stay in lane-wide VMEM-resident accumulators.
# ----------------------------------------------------------------------------
def _contrast_kernel(logits_ref, tgt_ref, nll_ref, sq_ref, cnt_ref,
                     *, chunk, n_chunks):
    @pl.when(pl.program_id(1) == 0)
    def _():
        nll_ref[...] = jnp.zeros_like(nll_ref)
        sq_ref[...] = jnp.zeros_like(sq_ref)
        cnt_ref[...] = jnp.zeros_like(cnt_ref)

    k = logits_ref.shape[1]
    # Identity used to transpose pixel-major chunks to class-major on the MXU
    # (idle in this kernel) -- avoids an XLA relayout pass over HBM and any
    # reliance on a vector-transpose lowering.
    eye = (jax.lax.broadcasted_iota(jnp.int32, (k, k), 0)
           == jax.lax.broadcasted_iota(jnp.int32, (k, k), 1)).astype(jnp.float32)
    cls = jax.lax.broadcasted_iota(jnp.int32, (k, chunk), 0)   # class ids

    for ci in range(n_chunks):                # static, short unrolled loop
        a, b = ci * chunk, (ci + 1) * chunk
        lg = logits_ref[a:b, :].astype(jnp.float32)             # (chunk, k)
        # class-major (k, chunk): lanes = pixels
        lg_t = jax.lax.dot_general(eye, lg, (((1,), (1,)), ((), ())),
                                   preferred_element_type=jnp.float32)
        tgt = tgt_ref[:, a:b]                                   # (1, chunk)

        valid = jnp.logical_and(tgt >= 0, tgt < k)              # (1, chunk)
        vf = valid.astype(jnp.float32)
        onehot = (cls == tgt).astype(jnp.float32)               # (k, chunk)
        picked = jnp.sum(lg_t * onehot, axis=0, keepdims=True)  # (1, chunk)
        mx = jnp.max(lg_t, axis=0, keepdims=True)
        lse = mx + jnp.log(jnp.sum(jnp.exp(lg_t - mx), axis=0, keepdims=True))

        nll_ref[:, :, a:b] += (vf * (lse - picked))[None]
        sq_ref[:, :, a:b] += (vf * (1.0 - picked) ** 2)[None]
        cnt_ref[:, :, a:b] += vf[None]


def _contrast_tail_sums(logits, target):
    """Pure-XLA path for the (< one tile) leftover rows."""
    k = logits.shape[1]
    lg = logits.astype(jnp.float32)
    tgt = target.astype(jnp.int32)
    valid = jnp.logical_and(tgt >= 0, tgt < k)
    vf = valid.astype(jnp.float32)
    safe = jnp.clip(tgt, 0, k - 1)
    picked = jnp.take_along_axis(lg, safe[:, None], axis=1)[:, 0]
    mx = jnp.max(lg, axis=1)
    lse = mx + jnp.log(jnp.sum(jnp.exp(lg - mx[:, None]), axis=1))
    return (jnp.sum(vf * (lse - picked)),
            jnp.sum(vf * (1.0 - picked) ** 2),
            jnp.sum(vf))


def _contrast_sums(logits, target):
    """Returns (sum NLL, sum (1 - gathered)^2, count of valid rows)."""
    m, k = logits.shape
    tgt = target.astype(jnp.int32)
    if m < _N_SPLIT * 128:                     # degenerate tiny input
        return _contrast_tail_sums(logits, tgt)

    # Chunk of pixels processed per inner step (bounds the transposed live set)
    chunk = min(1024,
                max(128, (49152 // max(k, 1)) // 128 * 128),
                (m // _N_SPLIT) // 128 * 128)
    # Rows per DMA block (per grid step); multiple of chunk.
    tile = min(_MAX_CONTRAST_TILE, m // _N_SPLIT)
    tile = max(chunk, (tile // chunk) * chunk)
    n_chunks = tile // chunk

    blocks = m // tile
    tiles_per_split = blocks // _N_SPLIT
    rows_main = _N_SPLIT * tiles_per_split * tile   # rows covered by the kernel

    tgt_row = tgt.reshape(1, m)                      # free relayout
    acc = jax.ShapeDtypeStruct((_N_SPLIT, 1, tile), jnp.float32)
    kern = functools.partial(_contrast_kernel, chunk=chunk, n_chunks=n_chunks)
    nll, sq, cnt = pl.pallas_call(
        kern,
        out_shape=(acc, acc, acc),
        grid=(_N_SPLIT, tiles_per_split),
        in_specs=[
            pl.BlockSpec((tile, k), lambda s, j: (s * tiles_per_split + j, 0)),
            pl.BlockSpec((1, tile), lambda s, j: (0, s * tiles_per_split + j)),
        ],
        out_specs=(
            pl.BlockSpec((1, 1, tile), lambda s, j: (s, 0, 0)),
            pl.BlockSpec((1, 1, tile), lambda s, j: (s, 0, 0)),
            pl.BlockSpec((1, 1, tile), lambda s, j: (s, 0, 0)),
        ),
        compiler_params=pltpu.CompilerParams(
            dimension_semantics=("parallel", "arbitrary"),
            vmem_limit_bytes=_VMEM_LIMIT),
    )(logits, tgt_row)

    nll_s, sq_s, cnt_s = jnp.sum(nll), jnp.sum(sq), jnp.sum(cnt)
    if rows_main < m:                              # small XLA tail, no HBM pad
        t_nll, t_sq, t_cnt = _contrast_tail_sums(logits[rows_main:],
                                                 tgt[rows_main:])
        nll_s, sq_s, cnt_s = nll_s + t_nll, sq_s + t_sq, cnt_s + t_cnt
    return nll_s, sq_s, cnt_s


# ----------------------------------------------------------------------------
# Kernel 2: fused bilinear upsample (align_corners=True) + pixel-wise CE.
#   Stage 1: one wide bf16 MXU matmul H-interpolates ALL classes at once into
#            a VMEM scratch (TILE_H, C*Ws).
#   Stage 2: per class, one bf16 MXU matmul against Rw^T produces the
#            (TILE_H, Wp) logits, consumed immediately by an online softmax.
# ----------------------------------------------------------------------------
def _seg_ce_kernel(seg_ref, rh_ref, rwt_ref, tgt_ref, nll_ref, cnt_ref,
                   stage1_ref, *, n_classes, ws):
    @pl.when(jnp.logical_and(pl.program_id(1) == 0, pl.program_id(2) == 0))
    def _():
        nll_ref[...] = jnp.zeros_like(nll_ref)
        cnt_ref[...] = jnp.zeros_like(cnt_ref)

    # Stage 1: batched H-interpolation for all classes in one matmul.
    stage1_ref[...] = jnp.dot(
        rh_ref[...], seg_ref[0],
        preferred_element_type=jnp.float32).astype(stage1_ref.dtype)

    tgt = tgt_ref[0]          # (TILE_H, Wp) int32
    rwt = rwt_ref[...]        # (Ws, Wp) bf16

    def class_logits(ci):     # stage 2: W-interpolation for one class
        return jnp.dot(stage1_ref[:, ci * ws:(ci + 1) * ws], rwt,
                       preferred_element_type=jnp.float32)      # (TILE_H, Wp)

    # Online softmax over classes: live set ~4 tiles, each class tile is
    # produced and consumed once (no per-class list / no spills).
    lg0 = class_logits(0)
    m = lg0
    s = jnp.ones_like(lg0)
    picked = jnp.where(tgt == 0, lg0, 0.0)
    for ci in range(1, n_classes):
        lg = class_logits(ci)
        m_new = jnp.maximum(m, lg)
        s = s * jnp.exp(m - m_new) + jnp.exp(lg - m_new)
        picked = picked + jnp.where(tgt == ci, lg, 0.0)
        m = m_new
    lse = m + jnp.log(s)

    valid = jnp.logical_and(tgt >= 0, tgt < n_classes)   # masks padded H/W too
    vf = valid.astype(jnp.float32)
    nll_ref[...] += (vf * (lse - picked))[None]
    cnt_ref[...] += vf[None]


def _seg_ce_sums(seg, target, out_h: int, out_w: int):
    """Returns (sum of per-pixel NLL, count of valid pixels)."""
    n, c, hs, ws = seg.shape
    tile_h = min(_MAX_TILE_H, _round_up(pl.cdiv(out_h, _N_SPLIT), 16))
    h_pad = _round_up(out_h, _N_SPLIT * tile_h)
    ht_per_split = h_pad // (_N_SPLIT * tile_h)
    w_pad = _round_up(out_w, 128)          # lane-dense accumulator stores

    # Class-blocked (N, Hs, C*Ws) bf16 layout for the batched stage-1 matmul
    # (tiny array, one cheap host-side relayout).
    seg_flat = jnp.transpose(seg, (0, 2, 1, 3)).reshape(n, hs, c * ws)
    seg_flat = seg_flat.astype(jnp.bfloat16)

    rh = _interp_matrix(out_h, hs)                    # (H, Hs)
    rwt = jnp.transpose(_interp_matrix(out_w, ws))    # (Ws, W)
    tgt = target.astype(jnp.int32)
    if h_pad != out_h:
        rh = jnp.pad(rh, ((0, h_pad - out_h), (0, 0)))          # zero rows
    if w_pad != out_w:
        rwt = jnp.pad(rwt, ((0, 0), (0, w_pad - out_w)))        # zero cols
    if (h_pad != out_h) or (w_pad != out_w):
        tgt = jnp.pad(tgt, ((0, 0), (0, h_pad - out_h), (0, w_pad - out_w)),
                      constant_values=-1)                       # masked pixels
    # bf16 matmul operands (f32 accumulation).  TODO(synk): bf16 interpolation
    # loses ~3 decimal digits on the upsampled logits; fine for a scalar loss.
    rh = rh.astype(jnp.bfloat16)
    rwt = rwt.astype(jnp.bfloat16)

    acc = jax.ShapeDtypeStruct((_N_SPLIT, tile_h, w_pad), jnp.float32)
    kern = functools.partial(_seg_ce_kernel, n_classes=c, ws=ws)
    nll, cnt = pl.pallas_call(
        kern,
        out_shape=(acc, acc),
        grid=(_N_SPLIT, n, ht_per_split),
        in_specs=[
            pl.BlockSpec((1, hs, c * ws), lambda s, b, t: (b, 0, 0)),
            pl.BlockSpec((tile_h, hs),
                         lambda s, b, t: (s * ht_per_split + t, 0)),
            pl.BlockSpec((ws, w_pad), lambda s, b, t: (0, 0)),
            pl.BlockSpec((1, tile_h, w_pad),
                         lambda s, b, t: (b, s * ht_per_split + t, 0)),
        ],
        out_specs=(
            pl.BlockSpec((1, tile_h, w_pad), lambda s, b, t: (s, 0, 0)),
            pl.BlockSpec((1, tile_h, w_pad), lambda s, b, t: (s, 0, 0)),
        ),
        scratch_shapes=[pltpu.VMEM((tile_h, c * ws), jnp.bfloat16)],
        compiler_params=pltpu.CompilerParams(
            dimension_semantics=("parallel", "arbitrary", "arbitrary"),
            vmem_limit_bytes=_VMEM_LIMIT),
    )(seg_flat, rh, rwt, tgt)
    return jnp.sum(nll), jnp.sum(cnt)


# ----------------------------------------------------------------------------
# PixelPrototypeCELoss.forward (dict path)
# ----------------------------------------------------------------------------
@jax.jit
def pixel_prototype_ce_loss(seg, contrast_logits, contrast_target, target):
    """seg: (N, C, Hs, Ws); contrast_logits: (M, K); contrast_target: (M,);
    target: (N, H, W) or (N, 1, H, W) integer class map."""
    if target.ndim == 4:
        target = jnp.squeeze(target, axis=1)
    _, h, w = target.shape

    # PAAC: cross_entropy(contrast_logits, contrast_target.long())  (mean)
    # PCD : mean((1 - gather(contrast_logits, 1, target))^2) over valid rows
    nll_con, sq_con, cnt_con = _contrast_sums(contrast_logits, contrast_target)
    denom = jnp.maximum(cnt_con, 1.0)
    loss_pca = nll_con / denom
    loss_pcd = sq_con / denom
    # TODO(synk): PyTorch only ignores ignore_index=-100; any other
    # out-of-range target would raise in torch — here such rows are masked.

    # Seg branch: fused bilinear upsample (align_corners=True) + CE ('mean').
    nll_seg, cnt_seg = _seg_ce_sums(seg, target, h, w)
    loss_seg = nll_seg / jnp.maximum(cnt_seg, 1.0)

    return LAMBDA0 * loss_seg + LAMBDA1 * loss_pca + LAMBDA2 * loss_pcd


# ----------------------------------------------------------------------------
if __name__ == "__main__":
    key = jax.random.PRNGKey(0)
    k_seg, k_tgt, k_cl, k_ct = jax.random.split(key, 4)

    # Small shapes consistent with the module:
    N, C = 2, 4              # batch, segmentation classes
    HS = WS = 8              # seg feature-map spatial size (pre-interpolation)
    H = W = 16               # target / upsampled spatial size
    M, K = N * H * W, 16     # contrast rows (pixels), prototype-class count

    seg = jax.random.normal(k_seg, (N, C, HS, WS), dtype=jnp.float32)
    target = jax.random.randint(k_tgt, (N, 1, H, W), 0, C, dtype=jnp.int32)
    contrast_logits = jax.random.normal(k_cl, (M, K), dtype=jnp.float32)
    contrast_target = jax.random.randint(
        k_ct, (M,), 0, K, dtype=jnp.int32).astype(jnp.float32)

    loss = pixel_prototype_ce_loss(seg, contrast_logits, contrast_target,
                                   target)
    jax.block_until_ready(loss)
    print("KERNEL_OK")
</pallas_src>

<mosaic_0001>
module attributes {stable_mosaic.version = 11 : i64} {
  func.func @_seg_ce_kernel(%arg0: i32, %arg1: i32, %arg2: i32, %arg3: memref<1x8x32xbf16, #tpu.memory_space<vmem>>, %arg4: memref<16x8xbf16, #tpu.memory_space<vmem>>, %arg5: memref<8x128xbf16, #tpu.memory_space<vmem>>, %arg6: memref<1x16x128xi32, #tpu.memory_space<vmem>>, %arg7: memref<1x16x128xf32, #tpu.memory_space<vmem>>, %arg8: memref<1x16x128xf32, #tpu.memory_space<vmem>>, %arg9: memref<16x32xbf16, #tpu.memory_space<vmem>>) attributes {dimension_semantics = [#tpu.dimension_semantics<parallel>, #tpu.dimension_semantics<arbitrary>, #tpu.dimension_semantics<arbitrary>], iteration_bounds = array<i64: 2, 2, 1>, scalar_prefetch = 0 : i64, scratch_operands = 1 : i64, tpu.core_type = #tpu.core_type<tc>, window_params = [{transform_indices = @transform_0, window_bounds = array<i64: 1, 8, 32>}, {transform_indices = @transform_1, window_bounds = array<i64: 16, 8>}, {pipeline_mode = #tpu.pipeline_mode<synchronous>, transform_indices = @transform_2, window_bounds = array<i64: 8, 128>}, {transform_indices = @transform_3, window_bounds = array<i64: 1, 16, 128>}, {transform_indices = @transform_4, window_bounds = array<i64: 1, 16, 128>}, {transform_indices = @transform_5, window_bounds = array<i64: 1, 16, 128>}]} {
    %c0_i32 = arith.constant 0 : i32
    %0 = arith.cmpi eq, %arg1, %c0_i32 : i32
    %c0_i32_0 = arith.constant 0 : i32
    %1 = arith.cmpi eq, %arg2, %c0_i32_0 : i32
    %2 = arith.andi %0, %1 : i1
    %3 = arith.extui %2 : i1 to i32
    %c0_i32_1 = arith.constant 0 : i32
    %4 = arith.cmpi ne, %3, %c0_i32_1 : i32
    scf.if %4 {
      %cst_41 = arith.constant 0.000000e+00 : f32
      %82 = vector.broadcast %cst_41 : f32 to vector<1x16x128xf32>
      %c0_42 = arith.constant 0 : index
      %c0_43 = arith.constant 0 : index
      %c0_44 = arith.constant 0 : index
      %83 = vector.load %arg7[%c0_42, %c0_43, %c0_44] : memref<1x16x128xf32, #tpu.memory_space<vmem>>, vector<1x16x128xf32>
      tpu.vector_store %arg7[%c0_42, %c0_43, %c0_44], %82 {strides = array<i32>} : memref<1x16x128xf32, #tpu.memory_space<vmem>>, vector<1x16x128xf32>,
      %cst_45 = arith.constant 0.000000e+00 : f32
      %84 = vector.broadcast %cst_45 : f32 to vector<1x16x128xf32>
      %c0_46 = arith.constant 0 : index
      %c0_47 = arith.constant 0 : index
      %c0_48 = arith.constant 0 : index
      %85 = vector.load %arg8[%c0_46, %c0_47, %c0_48] : memref<1x16x128xf32, #tpu.memory_space<vmem>>, vector<1x16x128xf32>
      tpu.vector_store %arg8[%c0_46, %c0_47, %c0_48], %84 {strides = array<i32>} : memref<1x16x128xf32, #tpu.memory_space<vmem>>, vector<1x16x128xf32>,
    } else {
    }
    %c0 = arith.constant 0 : index
    %c0_2 = arith.constant 0 : index
    %5 = vector.load %arg4[%c0, %c0_2] : memref<16x8xbf16, #tpu.memory_space<vmem>>, vector<16x8xbf16>
    %c0_3 = arith.constant 0 : index
    %c0_4 = arith.constant 0 : index
    %c0_5 = arith.constant 0 : index
    %6 = vector.load %arg3[%c0_3, %c0_4, %c0_5] : memref<1x8x32xbf16, #tpu.memory_space<vmem>>, vector<1x8x32xbf16>
    %7 = vector.shape_cast %6 : vector<1x8x32xbf16> to vector<8x32xbf16>
    %cst = arith.constant dense<0.000000e+00> : vector<16x32xf32>
    %8 = tpu.matmul %5, %7, %cst {dimension_numbers = #tpu.dot_dimension_numbers<[1], [0], [0], [1], [0, 0, 1, 1], [], []>} : vector<16x8xbf16>, vector<8x32xbf16>, vector<16x32xf32> -> vector<16x32xf32>
    %9 = arith.truncf %8 : vector<16x32xf32> to vector<16x32xbf16>
    %c0_6 = arith.constant 0 : index
    %c0_7 = arith.constant 0 : index
    %10 = vector.load %arg9[%c0_6, %c0_7] : memref<16x32xbf16, #tpu.memory_space<vmem>>, vector<16x32xbf16>
    tpu.vector_store %arg9[%c0_6, %c0_7], %9 {strides = array<i32>} : memref<16x32xbf16, #tpu.memory_space<vmem>>, vector<16x32xbf16>,
    %c0_8 = arith.constant 0 : index
    %c0_9 = arith.constant 0 : index
    %c0_10 = arith.constant 0 : index
    %11 = vector.load %arg6[%c0_8, %c0_9, %c0_10] : memref<1x16x128xi32, #tpu.memory_space<vmem>>, vector<1x16x128xi32>
    %12 = vector.shape_cast %11 : vector<1x16x128xi32> to vector<16x128xi32>
    %c0_11 = arith.constant 0 : index
    %c0_12 = arith.constant 0 : index
    %13 = vector.load %arg5[%c0_11, %c0_12] : memref<8x128xbf16, #tpu.memory_space<vmem>>, vector<8x128xbf16>
    %c0_13 = arith.constant 0 : index
    %c0_14 = arith.constant 0 : index
    %14 = vector.load %arg9[%c0_13, %c0_14] : memref<16x32xbf16, #tpu.memory_space<vmem>>, vector<16x8xbf16>
    %cst_15 = arith.constant dense<0.000000e+00> : vector<16x128xf32>
    %15 = tpu.matmul %14, %13, %cst_15 {dimension_numbers = #tpu.dot_dimension_numbers<[1], [0], [0], [1], [0, 0, 1, 1], [], []>} : vector<16x8xbf16>, vector<8x128xbf16>, vector<16x128xf32> -> vector<16x128xf32>
    %cst_16 = arith.constant 1.000000e+00 : f32
    %16 = vector.broadcast %cst_16 : f32 to vector<16x128xf32>
    %c0_i32_17 = arith.constant 0 : i32
    %17 = vector.broadcast %c0_i32_17 : i32 to vector<16x128xi32>
    %18 = arith.cmpi eq, %12, %17 : vector<16x128xi32>
    %cst_18 = arith.constant 0.000000e+00 : f32
    %19 = vector.broadcast %cst_18 : f32 to vector<16x128xf32>
    %20 = arith.select %18, %15, %19 : vector<16x128xi1>, vector<16x128xf32>
    %c0_19 = arith.constant 0 : index
    %c8 = arith.constant 8 : index
    %21 = vector.load %arg9[%c0_19, %c8] : memref<16x32xbf16, #tpu.memory_space<vmem>>, vector<16x8xbf16>
    %cst_20 = arith.constant dense<0.000000e+00> : vector<16x128xf32>
    %22 = tpu.matmul %21, %13, %cst_20 {dimension_numbers = #tpu.dot_dimension_numbers<[1], [0], [0], [1], [0, 0, 1, 1], [], []>} : vector<16x8xbf16>, vector<8x128xbf16>, vector<16x128xf32> -> vector<16x128xf32>
    %23 = arith.maximumf %15, %22 : vector<16x128xf32>
    %24 = arith.subf %15, %23 : vector<16x128xf32>
    %25 = math.exp %24 : vector<16x128xf32>
    %26 = arith.mulf %16, %25 : vector<16x128xf32>
    %27 = arith.subf %22, %23 : vector<16x128xf32>
    %28 = math.exp %27 : vector<16x128xf32>
    %29 = arith.addf %26, %28 : vector<16x128xf32>
    %c1_i32 = arith.constant 1 : i32
    %30 = vector.broadcast %c1_i32 : i32 to vector<16x128xi32>
    %31 = arith.cmpi eq, %12, %30 : vector<16x128xi32>
    %cst_21 = arith.constant 0.000000e+00 : f32
    %32 = vector.broadcast %cst_21 : f32 to vector<16x128xf32>
    %33 = arith.select %31, %22, %32 : vector<16x128xi1>, vector<16x128xf32>
    %34 = arith.addf %20, %33 : vector<16x128xf32>
    %c0_22 = arith.constant 0 : index
    %c16 = arith.constant 16 : index
    %35 = vector.load %arg9[%c0_22, %c16] : memref<16x32xbf16, #tpu.memory_space<vmem>>, vector<16x8xbf16>
    %cst_23 = arith.constant dense<0.000000e+00> : vector<16x128xf32>
    %36 = tpu.matmul %35, %13, %cst_23 {dimension_numbers = #tpu.dot_dimension_numbers<[1], [0], [0], [1], [0, 0, 1, 1], [], []>} : vector<16x8xbf16>, vector<8x128xbf16>, vector<16x128xf32> -> vector<16x128xf32>
    %37 = arith.maximumf %23, %36 : vector<16x128xf32>
    %38 = arith.subf %23, %37 : vector<16x128xf32>
    %39 = math.exp %38 : vector<16x128xf32>
    %40 = arith.mulf %29, %39 : vector<16x128xf32>
    %41 = arith.subf %36, %37 : vector<16x128xf32>
    %42 = math.exp %41 : vector<16x128xf32>
    %43 = arith.addf %40, %42 : vector<16x128xf32>
    %c2_i32 = arith.constant 2 : i32
    %44 = vector.broadcast %c2_i32 : i32 to vector<16x128xi32>
    %45 = arith.cmpi eq, %12, %44 : vector<16x128xi32>
    %cst_24 = arith.constant 0.000000e+00 : f32
    %46 = vector.broadcast %cst_24 : f32 to vector<16x128xf32>
    %47 = arith.select %45, %36, %46 : vector<16x128xi1>, vector<16x128xf32>
    %48 = arith.addf %34, %47 : vector<16x128xf32>
    %c0_25 = arith.constant 0 : index
    %c24 = arith.constant 24 : index
    %49 = vector.load %arg9[%c0_25, %c24] : memref<16x32xbf16, #tpu.memory_space<vmem>>, vector<16x8xbf16>
    %cst_26 = arith.constant dense<0.000000e+00> : vector<16x128xf32>
    %50 = tpu.matmul %49, %13, %cst_26 {dimension_numbers = #tpu.dot_dimension_numbers<[1], [0], [0], [1], [0, 0, 1, 1], [], []>} : vector<16x8xbf16>, vector<8x128xbf16>, vector<16x128xf32> -> vector<16x128xf32>
    %51 = arith.maximumf %37, %50 : vector<16x128xf32>
    %52 = arith.subf %37, %51 : vector<16x128xf32>
    %53 = math.exp %52 : vector<16x128xf32>
    %54 = arith.mulf %43, %53 : vector<16x128xf32>
    %55 = arith.subf %50, %51 : vector<16x128xf32>
    %56 = math.exp %55 : vector<16x128xf32>
    %57 = arith.addf %54, %56 : vector<16x128xf32>
    %c3_i32 = arith.constant 3 : i32
    %58 = vector.broadcast %c3_i32 : i32 to vector<16x128xi32>
    %59 = arith.cmpi eq, %12, %58 : vector<16x128xi32>
    %cst_27 = arith.constant 0.000000e+00 : f32
    %60 = vector.broadcast %cst_27 : f32 to vector<16x128xf32>
    %61 = arith.select %59, %50, %60 : vector<16x128xi1>, vector<16x128xf32>
    %62 = arith.addf %48, %61 : vector<16x128xf32>
    %63 = math.log %57 : vector<16x128xf32>
    %64 = arith.addf %51, %63 : vector<16x128xf32>
    %c0_i32_28 = arith.constant 0 : i32
    %65 = vector.broadcast %c0_i32_28 : i32 to vector<16x128xi32>
    %66 = arith.cmpi sge, %12, %65 : vector<16x128xi32>
    %c4_i32 = arith.constant 4 : i32
    %67 = vector.broadcast %c4_i32 : i32 to vector<16x128xi32>
    %68 = arith.cmpi slt, %12, %67 : vector<16x128xi32>
    %69 = arith.andi %66, %68 : vector<16x128xi1>
    %70 = arith.extui %69 : vector<16x128xi1> to vector<16x128xi32>
    %71 = arith.sitofp %70 : vector<16x128xi32> to vector<16x128xf32>
    %c0_29 = arith.constant 0 : index
    %c0_30 = arith.constant 0 : index
    %c0_31 = arith.constant 0 : index
    %72 = vector.load %arg7[%c0_29, %c0_30, %c0_31] : memref<1x16x128xf32, #tpu.memory_space<vmem>>, vector<1x16x128xf32>
    %73 = arith.subf %64, %62 : vector<16x128xf32>
    %74 = arith.mulf %71, %73 : vector<16x128xf32>
    %75 = vector.shape_cast %74 : vector<16x128xf32> to vector<1x16x128xf32>
    %76 = arith.addf %72, %75 : vector<1x16x128xf32>
    %c0_32 = arith.constant 0 : index
    %c0_33 = arith.constant 0 : index
    %c0_34 = arith.constant 0 : index
    %77 = vector.load %arg7[%c0_32, %c0_33, %c0_34] : memref<1x16x128xf32, #tpu.memory_space<vmem>>, vector<1x16x128xf32>
    tpu.vector_store %arg7[%c0_32, %c0_33, %c0_34], %76 {strides = array<i32>} : memref<1x16x128xf32, #tpu.memory_space<vmem>>, vector<1x16x128xf32>,
    %c0_35 = arith.constant 0 : index
    %c0_36 = arith.constant 0 : index
    %c0_37 = arith.constant 0 : index
    %78 = vector.load %arg8[%c0_35, %c0_36, %c0_37] : memref<1x16x128xf32, #tpu.memory_space<vmem>>, vector<1x16x128xf32>
    %79 = vector.shape_cast %71 : vector<16x128xf32> to vector<1x16x128xf32>
    %80 = arith.addf %78, %79 : vector<1x16x128xf32>
    %c0_38 = arith.constant 0 : index
    %c0_39 = arith.constant 0 : index
    %c0_40 = arith.constant 0 : index
    %81 = vector.load %arg8[%c0_38, %c0_39, %c0_40] : memref<1x16x128xf32, #tpu.memory_space<vmem>>, vector<1x16x128xf32>
    tpu.vector_store %arg8[%c0_38, %c0_39, %c0_40], %80 {strides = array<i32>} : memref<1x16x128xf32, #tpu.memory_space<vmem>>, vector<1x16x128xf32>,
    return
  }
  func.func @transform_0(%arg0: i32, %arg1: i32, %arg2: i32) -> (i32, i32, i32) {
    %c0_i32 = arith.constant 0 : i32
    %c0_i32_0 = arith.constant 0 : i32
    %c0_i32_1 = arith.constant 0 : i32
    return %arg1, %c0_i32, %c0_i32_0 : i32, i32, i32
  }
  func.func @transform_1(%arg0: i32, %arg1: i32, %arg2: i32) -> (i32, i32) {
    %c1_i32 = arith.constant 1 : i32
    %0 = arith.muli %arg0, %c1_i32 : i32
    %1 = arith.addi %0, %arg2 : i32
    %c0_i32 = arith.constant 0 : i32
    %c0_i32_0 = arith.constant 0 : i32
    return %1, %c0_i32 : i32, i32
  }
  func.func @transform_2(%arg0: i32, %arg1: i32, %arg2: i32) -> (i32, i32) {
    %c0_i32 = arith.constant 0 : i32
    %c0_i32_0 = arith.constant 0 : i32
    %c0_i32_1 = arith.constant 0 : i32
    return %c0_i32, %c0_i32_0 : i32, i32
  }
  func.func @transform_3(%arg0: i32, %arg1: i32, %arg2: i32) -> (i32, i32, i32) {
    %c1_i32 = arith.constant 1 : i32
    %0 = arith.muli %arg0, %c1_i32 : i32
    %1 = arith.addi %0, %arg2 : i32
    %c0_i32 = arith.constant 0 : i32
    %c0_i32_0 = arith.constant 0 : i32
    return %arg1, %1, %c0_i32 : i32, i32, i32
  }
  func.func @transform_4(%arg0: i32, %arg1: i32, %arg2: i32) -> (i32, i32, i32) {
    %c0_i32 = arith.constant 0 : i32
    %c0_i32_0 = arith.constant 0 : i32
    %c0_i32_1 = arith.constant 0 : i32
    return %arg0, %c0_i32, %c0_i32_0 : i32, i32, i32
  }
  func.func @transform_5(%arg0: i32, %arg1: i32, %arg2: i32) -> (i32, i32, i32) {
    %c0_i32 = arith.constant 0 : i32
    %c0_i32_0 = arith.constant 0 : i32
    %c0_i32_1 = arith.constant 0 : i32
    return %arg0, %c0_i32, %c0_i32_0 : i32, i32, i32
  }
}

module attributes {stable_mosaic.version = 11 : i64} {
  func.func @_contrast_kernel(%arg0: i32, %arg1: i32, %arg2: memref<256x16xf32, #tpu.memory_space<vmem>>, %arg3: memref<1x256xi32, #tpu.memory_space<vmem>>, %arg4: memref<1x1x256xf32, #tpu.memory_space<vmem>>, %arg5: memref<1x1x256xf32, #tpu.memory_space<vmem>>, %arg6: memref<1x1x256xf32, #tpu.memory_space<vmem>>) attributes {dimension_semantics = [#tpu.dimension_semantics<parallel>, #tpu.dimension_semantics<arbitrary>], iteration_bounds = array<i64: 2, 1>, scalar_prefetch = 0 : i64, scratch_operands = 0 : i64, tpu.core_type = #tpu.core_type<tc>, window_params = [{transform_indices = @transform_0, window_bounds = array<i64: 256, 16>}, {transform_indices = @transform_1, window_bounds = array<i64: 1, 256>}, {transform_indices = @transform_2, window_bounds = array<i64: 1, 1, 256>}, {transform_indices = @transform_3, window_bounds = array<i64: 1, 1, 256>}, {transform_indices = @transform_4, window_bounds = array<i64: 1, 1, 256>}]} {
    %c0_i32 = arith.constant 0 : i32
    %0 = arith.cmpi eq, %arg1, %c0_i32 : i32
    %1 = arith.extui %0 : i1 to i32
    %c0_i32_0 = arith.constant 0 : i32
    %2 = arith.cmpi ne, %1, %c0_i32_0 : i32
    scf.if %2 {
      %cst_27 = arith.constant 0.000000e+00 : f32
      %53 = vector.broadcast %cst_27 : f32 to vector<1x1x256xf32>
      %c0_28 = arith.constant 0 : index
      %c0_29 = arith.constant 0 : index
      %c0_30 = arith.constant 0 : index
      %54 = vector.load %arg4[%c0_28, %c0_29, %c0_30] : memref<1x1x256xf32, #tpu.memory_space<vmem>>, vector<1x1x256xf32>
      tpu.vector_store %arg4[%c0_28, %c0_29, %c0_30], %53 {strides = array<i32>} : memref<1x1x256xf32, #tpu.memory_space<vmem>>, vector<1x1x256xf32>,
      %cst_31 = arith.constant 0.000000e+00 : f32
      %55 = vector.broadcast %cst_31 : f32 to vector<1x1x256xf32>
      %c0_32 = arith.constant 0 : index
      %c0_33 = arith.constant 0 : index
      %c0_34 = arith.constant 0 : index
      %56 = vector.load %arg5[%c0_32, %c0_33, %c0_34] : memref<1x1x256xf32, #tpu.memory_space<vmem>>, vector<1x1x256xf32>
      tpu.vector_store %arg5[%c0_32, %c0_33, %c0_34], %55 {strides = array<i32>} : memref<1x1x256xf32, #tpu.memory_space<vmem>>, vector<1x1x256xf32>,
      %cst_35 = arith.constant 0.000000e+00 : f32
      %57 = vector.broadcast %cst_35 : f32 to vector<1x1x256xf32>
      %c0_36 = arith.constant 0 : index
      %c0_37 = arith.constant 0 : index
      %c0_38 = arith.constant 0 : index
      %58 = vector.load %arg6[%c0_36, %c0_37, %c0_38] : memref<1x1x256xf32, #tpu.memory_space<vmem>>, vector<1x1x256xf32>
      tpu.vector_store %arg6[%c0_36, %c0_37, %c0_38], %57 {strides = array<i32>} : memref<1x1x256xf32, #tpu.memory_space<vmem>>, vector<1x1x256xf32>,
    } else {
    }
    %3 = tpu.iota {dimensions = array<i32: 0>} : vector<16x16xi32>
    %4 = tpu.iota {dimensions = array<i32: 1>} : vector<16x16xi32>
    %5 = arith.cmpi eq, %3, %4 : vector<16x16xi32>
    %6 = arith.extui %5 : vector<16x16xi1> to vector<16x16xi32>
    %7 = arith.sitofp %6 : vector<16x16xi32> to vector<16x16xf32>
    %8 = tpu.iota {dimensions = array<i32: 0>} : vector<16x256xi32>
    %c0 = arith.constant 0 : index
    %c0_1 = arith.constant 0 : index
    %9 = vector.load %arg2[%c0, %c0_1] : memref<256x16xf32, #tpu.memory_space<vmem>>, vector<256x16xf32>
    %cst = arith.constant dense<0.000000e+00> : vector<16x256xf32>
    %10 = tpu.matmul %7, %9, %cst {dimension_numbers = #tpu.dot_dimension_numbers<[1], [1], [0], [0], [0, 0, 1, 0], [], []>} : vector<16x16xf32>, vector<256x16xf32>, vector<16x256xf32> -> vector<16x256xf32>
    %c0_2 = arith.constant 0 : index
    %c0_3 = arith.constant 0 : index
    %11 = vector.load %arg3[%c0_2, %c0_3] : memref<1x256xi32, #tpu.memory_space<vmem>>, vector<1x256xi32>
    %c0_i32_4 = arith.constant 0 : i32
    %12 = vector.broadcast %c0_i32_4 : i32 to vector<1x256xi32>
    %13 = arith.cmpi sge, %11, %12 : vector<1x256xi32>
    %c16_i32 = arith.constant 16 : i32
    %14 = vector.broadcast %c16_i32 : i32 to vector<1x256xi32>
    %15 = arith.cmpi slt, %11, %14 : vector<1x256xi32>
    %16 = arith.andi %13, %15 : vector<1x256xi1>
    %17 = arith.extui %16 : vector<1x256xi1> to vector<1x256xi32>
    %18 = arith.sitofp %17 : vector<1x256xi32> to vector<1x256xf32>
    %19 = vector.broadcast %11 : vector<1x256xi32> to vector<16x256xi32>
    %20 = arith.cmpi eq, %8, %19 : vector<16x256xi32>
    %21 = arith.extui %20 : vector<16x256xi1> to vector<16x256xi32>
    %22 = arith.sitofp %21 : vector<16x256xi32> to vector<16x256xf32>
    %23 = arith.mulf %10, %22 : vector<16x256xf32>
    %cst_5 = arith.constant dense<0.000000e+00> : vector<256xf32>
    %24 = vector.multi_reduction <add>, %23, %cst_5 [0] : vector<16x256xf32> to vector<256xf32>
    %25 = vector.shape_cast %24 : vector<256xf32> to vector<1x256xf32>
    %cst_6 = arith.constant dense<0xFF800000> : vector<256xf32>
    %26 = vector.multi_reduction <maximumf>, %10, %cst_6 [0] : vector<16x256xf32> to vector<256xf32>
    %27 = vector.shape_cast %26 : vector<256xf32> to vector<1x256xf32>
    %28 = vector.broadcast %27 : vector<1x256xf32> to vector<16x256xf32>
    %29 = arith.subf %10, %28 : vector<16x256xf32>
    %30 = math.exp %29 : vector<16x256xf32>
    %cst_7 = arith.constant dense<0.000000e+00> : vector<256xf32>
    %31 = vector.multi_reduction <add>, %30, %cst_7 [0] : vector<16x256xf32> to vector<256xf32>
    %32 = vector.shape_cast %31 : vector<256xf32> to vector<1x256xf32>
    %33 = math.log %32 : vector<1x256xf32>
    %34 = arith.addf %27, %33 : vector<1x256xf32>
    %c0_8 = arith.constant 0 : index
    %c0_9 = arith.constant 0 : index
    %c0_10 = arith.constant 0 : index
    %35 = vector.load %arg4[%c0_8, %c0_9, %c0_10] : memref<1x1x256xf32, #tpu.memory_space<vmem>>, vector<1x1x256xf32>
    %36 = arith.subf %34, %25 : vector<1x256xf32>
    %37 = arith.mulf %18, %36 : vector<1x256xf32>
    %38 = vector.shape_cast %37 : vector<1x256xf32> to vector<1x1x256xf32>
    %39 = arith.addf %35, %38 : vector<1x1x256xf32>
    %c0_11 = arith.constant 0 : index
    %c0_12 = arith.constant 0 : index
    %c0_13 = arith.constant 0 : index
    %40 = vector.load %arg4[%c0_11, %c0_12, %c0_13] : memref<1x1x256xf32, #tpu.memory_space<vmem>>, vector<1x1x256xf32>
    tpu.vector_store %arg4[%c0_11, %c0_12, %c0_13], %39 {strides = array<i32>} : memref<1x1x256xf32, #tpu.memory_space<vmem>>, vector<1x1x256xf32>,
    %c0_14 = arith.constant 0 : index
    %c0_15 = arith.constant 0 : index
    %c0_16 = arith.constant 0 : index
    %41 = vector.load %arg5[%c0_14, %c0_15, %c0_16] : memref<1x1x256xf32, #tpu.memory_space<vmem>>, vector<1x1x256xf32>
    %cst_17 = arith.constant 1.000000e+00 : f32
    %42 = vector.broadcast %cst_17 : f32 to vector<1x256xf32>
    %43 = arith.subf %42, %25 : vector<1x256xf32>
    %44 = arith.mulf %43, %43 : vector<1x256xf32>
    %45 = arith.mulf %18, %44 : vector<1x256xf32>
    %46 = vector.shape_cast %45 : vector<1x256xf32> to vector<1x1x256xf32>
    %47 = arith.addf %41, %46 : vector<1x1x256xf32>
    %c0_18 = arith.constant 0 : index
    %c0_19 = arith.constant 0 : index
    %c0_20 = arith.constant 0 : index
    %48 = vector.load %arg5[%c0_18, %c0_19, %c0_20] : memref<1x1x256xf32, #tpu.memory_space<vmem>>, vector<1x1x256xf32>
    tpu.vector_store %arg5[%c0_18, %c0_19, %c0_20], %47 {strides = array<i32>} : memref<1x1x256xf32, #tpu.memory_space<vmem>>, vector<1x1x256xf32>,
    %c0_21 = arith.constant 0 : index
    %c0_22 = arith.constant 0 : index
    %c0_23 = arith.constant 0 : index
    %49 = vector.load %arg6[%c0_21, %c0_22, %c0_23] : memref<1x1x256xf32, #tpu.memory_space<vmem>>, vector<1x1x256xf32>
    %50 = vector.shape_cast %18 : vector<1x256xf32> to vector<1x1x256xf32>
    %51 = arith.addf %49, %50 : vector<1x1x256xf32>
    %c0_24 = arith.constant 0 : index
    %c0_25 = arith.constant 0 : index
    %c0_26 = arith.constant 0 : index
    %52 = vector.load %arg6[%c0_24, %c0_25, %c0_26] : memref<1x1x256xf32, #tpu.memory_space<vmem>>, vector<1x1x256xf32>
    tpu.vector_store %arg6[%c0_24, %c0_25, %c0_26], %51 {strides = array<i32>} : memref<1x1x256xf32, #tpu.memory_space<vmem>>, vector<1x1x256xf32>,
    return
  }
  func.func @transform_0(%arg0: i32, %arg1: i32) -> (i32, i32) {
    %c1_i32 = arith.constant 1 : i32
    %0 = arith.muli %arg0, %c1_i32 : i32
    %1 = arith.addi %0, %arg1 : i32
    %c0_i32 = arith.constant 0 : i32
    %c0_i32_0 = arith.constant 0 : i32
    return %1, %c0_i32 : i32, i32
  }
  func.func @transform_1(%arg0: i32, %arg1: i32) -> (i32, i32) {
    %c1_i32 = arith.constant 1 : i32
    %0 = arith.muli %arg0, %c1_i32 : i32
    %1 = arith.addi %0, %arg1 : i32
    %c0_i32 = arith.constant 0 : i32
    %c0_i32_0 = arith.constant 0 : i32
    return %c0_i32, %1 : i32, i32
  }
  func.func @transform_2(%arg0: i32, %arg1: i32) -> (i32, i32, i32) {
    %c0_i32 = arith.constant 0 : i32
    %c0_i32_0 = arith.constant 0 : i32
    %c0_i32_1 = arith.constant 0 : i32
    return %arg0, %c0_i32, %c0_i32_0 : i32, i32, i32
  }
  func.func @transform_3(%arg0: i32, %arg1: i32) -> (i32, i32, i32) {
    %c0_i32 = arith.constant 0 : i32
    %c0_i32_0 = arith.constant 0 : i32
    %c0_i32_1 = arith.constant 0 : i32
    return %arg0, %c0_i32, %c0_i32_0 : i32, i32, i32
  }
  func.func @transform_4(%arg0: i32, %arg1: i32) -> (i32, i32, i32) {
    %c0_i32 = arith.constant 0 : i32
    %c0_i32_0 = arith.constant 0 : i32
    %c0_i32_1 = arith.constant 0 : i32
    return %arg0, %c0_i32, %c0_i32_0 : i32, i32, i32
  }
}

</mosaic_0001>

<llo_original>
// kernel: pixel_prototype_ce_loss.3
$region0: #{pixel_prototype_ce_loss.3}
  #allocation0 [shape = 'u32[]', space=smem, size = 0x4, offset = 0x4, fixed_abs, tag = 'smem constant byte address 0x4 - core index']
  #allocation1 [shape = 'u32[144,128]{1,0:T(1,128)}', space=vmem, size = 0x12000, scoped, tag = 'internal scratch']
  #allocation2 [shape = 'bf16[16,32]{1,0:T(16,128)(2,1)}', space=vmem, size = 0x1000, scoped, tag = 'scratch operand']
  %s0 = inlined_call_operand.vmem [shape: bf16[2,8,32], index: 0, kind: input, shape index: {}]
  %s1 = inlined_call_operand.vmem [shape: bf16[32,8], index: 1, kind: input, shape index: {}]
  %s2 = inlined_call_operand.vmem [shape: bf16[8,128], index: 2, kind: input, shape index: {}]
  %s3 = inlined_call_operand.vmem [shape: s32[2,32,128], index: 3, kind: input, shape index: {}]
  %s4 = inlined_call_operand.vmem [shape: f32[2,16,128], index: 4, kind: output, shape index: {0}]
  %s5 = inlined_call_operand.vmem [shape: f32[2,16,128], index: 5, kind: output, shape index: {1}]
  %6 = xla_tuple %s4, %s5
  %s7 = sld [smem:[#allocation0]]
  $region61: #{pixel_prototype_ce_loss.3} parent=0
    _
  %s9 = ssub.s32 1, %s7
  %s10 = scalar_select 0, %s9, %s7
  loop: start=0, step=1, limit=6
  $region2: #{pixel_prototype_ce_loss.3} parent=0 // loop_pre_header
    _
  $region3: #{pixel_prototype_ce_loss.3} parent=0 // loop_header
    %s12 = sphi 0, %s16
    %p13 = scmp.ge.s32.totalorder %s12, 6
    %s19 = sphi 0, %s38
    %s20 = sphi 0, %s34
    %s21 = sphi 0, %s30
    %s22 = sphi 0, %s19
    %s23 = sphi 0, %s20
    %s24 = sphi 0, %s21
    %s25 = sphi 0, %s22
    %s26 = sphi 0, %s23
    %s27 = sphi 0, %s24
    %s41 = sphi 0, %s43
    %s44 = sphi 0, %s41
    %s45 = sphi 0, %s44
    %s61 = sphi 0, %s45
    %s69 = sphi 0, %s71
    %s72 = sphi 0, %s69
    %s73 = sphi 0, %s72
    %s89 = sphi 0, %s73
    %s93 = sphi 0, %s93
    %s95 = sphi 0, %s93
    %s96 = sphi 0, %s95
    %s110 = sphi 0, %s96
    %s120 = sphi 0, %s122
    %s123 = sphi 0, %s120
    %s124 = sphi 0, %s123
    %s140 = sphi 0, %s124
    %s146 = sphi 0, %s148
    %s149 = sphi 0, %s146
    %s150 = sphi 0, %s149
    %s166 = sphi 0, %s150
    %s172 = sphi 0, %s174
    %s175 = sphi 0, %s172
    %s176 = sphi 0, %s175
    %s192 = sphi 0, %s176
  $region4: #{pixel_prototype_ce_loss.3} parent=0 // loop_header_branch
    %15 = sbr.rel (%p13) target = $region8
  $region5: #{pixel_prototype_ce_loss.3} parent=0 // loop_body
    %s17 = ssub.s32 %s12, 1
    %s18 = ssub.s32 %s12, 2
    %s28 = sadd.s32 1, %s21
    %p29 = scmp.ge.s32.totalorder %s28, 1
    %s30 = scalar_select %p29, 0, %s28
    %s31 = sadd.s32 1, %s20
    %s32 = scalar_select %p29, %s31, %s20
    %p33 = scmp.ge.s32.totalorder %s32, 2
    %s34 = scalar_select %p33, 0, %s32
    %s35 = sadd.s32 1, %s19
    %s36 = scalar_select %p33, %s35, %s19
    %p37 = scmp.ge.s32.totalorder %s36, 2
    %s38 = scalar_select %p37, 0, %s36
    %s39 = ssub.s32 %s20, %s34
    %p40 = scmp.eq.s32.totalorder %s39, 0
    %s42 = sadd.s32 %s41, 1
    %s43 = scalar_select %p40, %s41, %s42
    %p46 = pneg %p40
    %p47 = scmp.eq.s32.totalorder %s12, 3
    %p48 = por %p46, %p47
    %p49 = scmp.ne.s32.totalorder %s41, %s44
    %p50 = scmp.eq.s32.totalorder %s12, 0
    %p51 = por %p49, %p50
    %p52 = scmp.ne.s32.totalorder %s41, %s44
    %p53 = scmp.eq.s32.totalorder %s17, 3
    %p54 = por %p52, %p53
    %p55 = scmp.ne.s32.totalorder %s44, %s45
    %p56 = scmp.eq.s32.totalorder %s17, 0
    %p57 = por %p55, %p56
    %p58 = scmp.ne.s32.totalorder %s44, %s45
    %p59 = scmp.eq.s32.totalorder %s18, 3
    %p60 = por %p58, %p59
    %p62 = scmp.ne.s32.totalorder %s45, %s61
    %p63 = scmp.eq.s32.totalorder %s18, 0
    %p64 = por %p62, %p63
    %s65 = sadd.s32 %s19, %s21
    %s66 = sadd.s32 %s38, %s30
    %s67 = ssub.s32 %s65, %s66
    %p68 = scmp.eq.s32.totalorder %s67, 0
    %s70 = sadd.s32 %s69, 1
    %s71 = scalar_select %p68, %s69, %s70
    %p74 = pneg %p68
    %p75 = scmp.eq.s32.totalorder %s12, 3
    %p76 = por %p74, %p75
    %p77 = scmp.ne.s32.totalorder %s69, %s72
    %p78 = scmp.eq.s32.totalorder %s12, 0
    %p79 = por %p77, %p78
    %p80 = scmp.ne.s32.totalorder %s69, %s72
    %p81 = scmp.eq.s32.totalorder %s17, 3
    %p82 = por %p80, %p81
    %p83 = scmp.ne.s32.totalorder %s72, %s73
    %p84 = scmp.eq.s32.totalorder %s17, 0
    %p85 = por %p83, %p84
    %p86 = scmp.ne.s32.totalorder %s72, %s73
    %p87 = scmp.eq.s32.totalorder %s18, 3
    %p88 = por %p86, %p87
    %p90 = scmp.ne.s32.totalorder %s73, %s89
    %p91 = scmp.eq.s32.totalorder %s18, 0
    %p92 = por %p90, %p91
    %s94 = sadd.s32 %s93, 1
    %p97 = scmp.eq.s32.totalorder %s12, 3
    %p98 = scmp.ne.s32.totalorder %s93, %s95
    %p99 = scmp.eq.s32.totalorder %s12, 0
    %p100 = por %p98, %p99
    %p101 = scmp.ne.s32.totalorder %s93, %s95
    %p102 = scmp.eq.s32.totalorder %s17, 3
    %p103 = por %p101, %p102
    %p104 = scmp.ne.s32.totalorder %s95, %s96
    %p105 = scmp.eq.s32.totalorder %s17, 0
    %p106 = por %p104, %p105
    %p107 = scmp.ne.s32.totalorder %s95, %s96
    %p108 = scmp.eq.s32.totalorder %s18, 3
    %p109 = por %p107, %p108
    %p111 = scmp.ne.s32.totalorder %s96, %s110
    %p112 = scmp.eq.s32.totalorder %s18, 0
    %p113 = por %p111, %p112
    %s114 = sadd.s32 %s19, %s21
    %s115 = sadd.s32 %s38, %s30
    %s116 = ssub.s32 %s20, %s34
    %s117 = ssub.s32 %s114, %s115
    %s118 = sor.u32 %s116, %s117
    %p119 = scmp.eq.s32.totalorder %s118, 0
    %s121 = sadd.s32 %s120, 1
    %s122 = scalar_select %p119, %s120, %s121
    %p125 = pneg %p119
    %p126 = scmp.eq.s32.totalorder %s12, 3
    %p127 = por %p125, %p126
    %p128 = scmp.ne.s32.totalorder %s120, %s123
    %p129 = scmp.eq.s32.totalorder %s12, 0
    %p130 = por %p128, %p129
    %p131 = scmp.ne.s32.totalorder %s120, %s123
    %p132 = scmp.eq.s32.totalorder %s17, 3
    %p133 = por %p131, %p132
    %p134 = scmp.ne.s32.totalorder %s123, %s124
    %p135 = scmp.eq.s32.totalorder %s17, 0
    %p136 = por %p134, %p135
    %p137 = scmp.ne.s32.totalorder %s123, %s124
    %p138 = scmp.eq.s32.totalorder %s18, 3
    %p139 = por %p137, %p138
    %p141 = scmp.ne.s32.totalorder %s124, %s140
    %p142 = scmp.eq.s32.totalorder %s18, 0
    %p143 = por %p141, %p142
    %s144 = ssub.s32 %s19, %s38
    %p145 = scmp.eq.s32.totalorder %s144, 0
    %s147 = sadd.s32 %s146, 1
    %s148 = scalar_select %p145, %s146, %s147
    %p151 = pneg %p145
    %p152 = scmp.eq.s32.totalorder %s12, 3
    %p153 = por %p151, %p152
    %p154 = scmp.ne.s32.totalorder %s146, %s149
    %p155 = scmp.eq.s32.totalorder %s12, 0
    %p156 = por %p154, %p155
    %p157 = scmp.ne.s32.totalorder %s146, %s149
    %p158 = scmp.eq.s32.totalorder %s17, 3
    %p159 = por %p157, %p158
    %p160 = scmp.ne.s32.totalorder %s149, %s150
    %p161 = scmp.eq.s32.totalorder %s17, 0
    %p162 = por %p160, %p161
    %p163 = scmp.ne.s32.totalorder %s149, %s150
    %p164 = scmp.eq.s32.totalorder %s18, 3
    %p165 = por %p163, %p164
    %p167 = scmp.ne.s32.totalorder %s150, %s166
    %p168 = scmp.eq.s32.totalorder %s18, 0
    %p169 = por %p167, %p168
    %s170 = ssub.s32 %s19, %s38
    %p171 = scmp.eq.s32.totalorder %s170, 0
    %s173 = sadd.s32 %s172, 1
    %s174 = scalar_select %p171, %s172, %s173
    %p177 = pneg %p171
    %p178 = scmp.eq.s32.totalorder %s12, 3
    %p179 = por %p177, %p178
    %p180 = scmp.ne.s32.totalorder %s172, %s175
    %p181 = scmp.eq.s32.totalorder %s12, 0
    %p182 = por %p180, %p181
    %p183 = scmp.ne.s32.totalorder %s172, %s175
    %p184 = scmp.eq.s32.totalorder %s17, 3
    %p185 = por %p183, %p184
    %p186 = scmp.ne.s32.totalorder %s175, %s176
    %p187 = scmp.eq.s32.totalorder %s17, 0
    %p188 = por %p186, %p187
    %p189 = scmp.ne.s32.totalorder %s175, %s176
    %p190 = scmp.eq.s32.totalorder %s18, 3
    %p191 = por %p189, %p190
    %p193 = scmp.ne.s32.totalorder %s176, %s192
    %p194 = scmp.eq.s32.totalorder %s18, 0
    %p195 = por %p193, %p194
    %p196 = scmp.le.s32.totalorder 1, %s12
    %p197 = scmp.lt.s32.totalorder %s12, 5
    %p198 = pnand %p196, %p197
    %p199 = pneg %p198
    // Predicated region
    $region9: #{pixel_prototype_ce_loss.3} parent=5 // pred_check
      _
    $region10: #{pixel_prototype_ce_loss.3} parent=5 // pred_check_branch
      %201 = sbr.rel (%p198) target = $region12
    $region11: #{pixel_prototype_ce_loss.3} parent=5 // pred_region
      %s202 = ssub.s32 %s12, 1
      // Predicated region
      $region13: #{pixel_prototype_ce_loss.3} parent=11 // pred_check
        %p203 = pneg %p106
      $region14: #{pixel_prototype_ce_loss.3} parent=11 // pred_check_branch
        %205 = sbr.rel (%p203) target = $region16
      $region15: #{pixel_prototype_ce_loss.3} parent=11 // pred_region
        _
      $region16: #{pixel_prototype_ce_loss.3} parent=11 // pred_fallthru
        _
    $region12: #{pixel_prototype_ce_loss.3} parent=5 // pred_fallthru
      _
    %p206 = scmp.lt.s32.totalorder %s12, 4
    // Predicated region
    $region17: #{pixel_prototype_ce_loss.3} parent=5 // pred_check
      %p207 = pneg %p206
    $region18: #{pixel_prototype_ce_loss.3} parent=5 // pred_check_branch
      %209 = sbr.rel (%p207) target = $region20
    $region19: #{pixel_prototype_ce_loss.3} parent=5 // pred_region
      // Predicated region
      $region21: #{pixel_prototype_ce_loss.3} parent=19 // pred_check
        %p210 = pneg %p51
      $region22: #{pixel_prototype_ce_loss.3} parent=19 // pred_check_branch
        %212 = sbr.rel (%p210) target = $region24
      $region23: #{pixel_prototype_ce_loss.3} parent=19 // pred_region
        %p213 = scmp.lt.s32.totalorder %s20, 1
        %s214 = scalar_select %p213, %s20, 1
        %s215 = smul.addr %s214, 4
        %s216 = scalar_lea.vmem %s0, %s215
      $region24: #{pixel_prototype_ce_loss.3} parent=19 // pred_fallthru
        _
      // Predicated region
      $region25: #{pixel_prototype_ce_loss.3} parent=19 // pred_check
        %p217 = pneg %p79
      $region26: #{pixel_prototype_ce_loss.3} parent=19 // pred_check_branch
        %219 = sbr.rel (%p217) target = $region28
      $region27: #{pixel_prototype_ce_loss.3} parent=19 // pred_region
        %s220 = sadd.s32 %s19, %s21
        %s221 = smul.u32 2, %s220
        %p222 = scmp.lt.s32.totalorder %s221, 3
        %s223 = scalar_select %p222, %s221, 3
        %s224 = smul.addr %s223, 4
        %s225 = scalar_lea.vmem %s1, %s224
        %s226 = sadd.s32 %s19, %s21
        %s227 = smul.u32 2, %s226
      $region28: #{pixel_prototype_ce_loss.3} parent=19 // pred_fallthru
        _
      // Predicated region
      $region29: #{pixel_prototype_ce_loss.3} parent=19 // pred_check
        %p228 = pneg %p130
      $region30: #{pixel_prototype_ce_loss.3} parent=19 // pred_check_branch
        %230 = sbr.rel (%p228) target = $region32
      $region31: #{pixel_prototype_ce_loss.3} parent=19 // pred_region
        %s231 = sadd.s32 %s19, %s21
        %s232 = smul.u32 2, %s231
        %p233 = scmp.lt.s32.totalorder %s20, 1
        %s234 = scalar_select %p233, %s20, 1
        %p235 = scmp.lt.s32.totalorder %s232, 3
        %s236 = scalar_select %p235, %s232, 3
        %s237 = smul.addr %s234, 4
        %s238 = sadd.s32 %s236, %s237
        %s239 = smul.addr %s238, 8
        %s240 = scalar_lea.vmem %s3, %s239
        %s241 = sadd.s32 %s19, %s21
        %s242 = smul.u32 2, %s241
      $region32: #{pixel_prototype_ce_loss.3} parent=19 // pred_fallthru
        _
    $region20: #{pixel_prototype_ce_loss.3} parent=5 // pred_fallthru
      _
    %p243 = scmp.le.s32.totalorder 1, %s12
    %p244 = scmp.lt.s32.totalorder %s12, 5
    %p245 = pnand %p243, %p244
    %p246 = pneg %p245
    // Predicated region
    $region33: #{pixel_prototype_ce_loss.3} parent=5 // pred_check
      _
    $region34: #{pixel_prototype_ce_loss.3} parent=5 // pred_check_branch
      %248 = sbr.rel (%p245) target = $region36
    $region35: #{pixel_prototype_ce_loss.3} parent=5 // pred_region
      %s249 = ssub.s32 %s12, 1
      %p250 = scmp.lt.s32.totalorder %s23, 1
      %s251 = scalar_select %p250, %s23, 1
      %s252 = smul.addr %s251, 4
      %s253 = scalar_lea.vmem %s0, %s252
      %p254 = pneg %p57
      %p255 = pneg %p54
      %s256 = sadd.s32 %s22, %s24
      %s257 = smul.u32 2, %s256
      %p258 = scmp.lt.s32.totalorder %s257, 3
      %s259 = scalar_select %p258, %s257, 3
      %s260 = smul.addr %s259, 4
      %s261 = scalar_lea.vmem %s1, %s260
      %p262 = pneg %p85
      %p263 = pneg %p82
      %p264 = pneg %p106
      %p265 = pneg %p103
      %s266 = sadd.s32 %s22, %s24
      %s267 = smul.u32 2, %s266
      %p268 = scmp.lt.s32.totalorder %s23, 1
      %s269 = scalar_select %p268, %s23, 1
      %p270 = scmp.lt.s32.totalorder %s267, 3
      %s271 = scalar_select %p270, %s267, 3
      %s272 = smul.addr %s269, 4
      %s273 = sadd.s32 %s271, %s272
      %s274 = smul.addr %s273, 8
      %s275 = scalar_lea.vmem %s3, %s274
      %p276 = pneg %p136
      %p277 = pneg %p133
      %p278 = pneg %p162
      %p279 = pneg %p159
      %p280 = scmp.lt.s32.totalorder %s22, 1
      %s281 = scalar_select %p280, %s22, 1
      %s282 = smul.addr %s281, 2
      %s283 = smul.addr %s282, 8
      %s284 = scalar_lea.vmem %s4, %s283
      %p285 = pneg %p188
      %p286 = pneg %p185
      %p287 = scmp.lt.s32.totalorder %s22, 1
      %s288 = scalar_select %p287, %s22, 1
      %s289 = smul.addr %s288, 2
      %s290 = smul.addr %s289, 8
      %s291 = scalar_lea.vmem %s5, %s290
      %p292 = scmp.lt.s32.totalorder %s23, 1
      %s293 = scalar_select %p292, %s23, 1
      %s294 = smul.addr %s293, 4
      %s295 = scalar_lea.vmem %s0, %s294
      %s296 = sadd.s32 %s22, %s24
      %s297 = smul.u32 2, %s296
      %p298 = scmp.lt.s32.totalorder %s297, 3
      %s299 = scalar_select %p298, %s297, 3
      %s300 = smul.addr %s299, 4
      %s301 = scalar_lea.vmem %s1, %s300
      %s302 = sadd.s32 %s22, %s24
      %s303 = smul.u32 2, %s302
      %s304 = sadd.s32 %s22, %s24
      %s305 = smul.u32 2, %s304
      %p306 = scmp.lt.s32.totalorder %s23, 1
      %s307 = scalar_select %p306, %s23, 1
      %p308 = scmp.lt.s32.totalorder %s305, 3
      %s309 = scalar_select %p308, %s305, 3
      %s310 = smul.addr %s307, 4
      %s311 = sadd.s32 %s309, %s310
      %s312 = smul.addr %s311, 8
      %s313 = scalar_lea.vmem %s3, %s312
      %s314 = sadd.s32 %s22, %s24
      %s315 = smul.u32 2, %s314
      %p316 = scmp.lt.s32.totalorder %s22, 1
      %s317 = scalar_select %p316, %s22, 1
      %s318 = smul.addr %s317, 2
      %s319 = smul.addr %s318, 8
      %s320 = scalar_lea.vmem %s4, %s319
      %p321 = scmp.lt.s32.totalorder %s22, 1
      %s322 = scalar_select %p321, %s22, 1
      %s323 = smul.addr %s322, 2
      %s324 = smul.addr %s323, 8
      %s325 = scalar_lea.vmem %s5, %s324
      %p327 = scmp.eq.s32.totalorder %s23, 0
      %p328 = scmp.eq.s32.totalorder %s24, 0
      %p329 = pnand %p327, %p328
      %p330 = pneg %p329
      // Predicated region
      $region37: #{pixel_prototype_ce_loss.3} parent=35 // pred_check
        _
      $region38: #{pixel_prototype_ce_loss.3} parent=35 // pred_check_branch
        %332 = sbr.rel (%p329) target = $region40
      $region39: #{pixel_prototype_ce_loss.3} parent=35 // pred_region
        %333 = vst [vmem:[%s320] sm:$0xff] 0.0
        %334 = vst [vmem:[%s320 + $0x8] sm:$0xff] 0.0
        %335 = vst [vmem:[%s325] sm:$0xff] 0.0
        %336 = vst [vmem:[%s325 + $0x8] sm:$0xff] 0.0
      $region40: #{pixel_prototype_ce_loss.3} parent=35 // pred_fallthru
        _
      %v337 = vld [vmem:[%s301] sm:$0xf]
      %v338 = vld [vmem:[%s301 + $0x4] sm:$0xf]
      %v339 = vld [vmem:[%s295] sm:$0xf]
      %v342 = vunpack.c.l.b16 %v337
      %v343 = vunpack.c.l.b16 %v338
      %v344 = vpack.c.b16 %v343, %v342
      %vm345 = vcmask 64512
      %v347 = vsel %vm345, %v344, 0
      %vm349 = vcmask 1043456
      %v351 = vsel %vm349, %v339, 0
      %353 = vmatprep.subr.bf16.mxu0 0
      %354 = vmatpush1.bf16.msra.mxu0 %v351
      %355 = vmatprep.subr.bf16.mxu0 0
      %356 = vmatpush1.bf16.msra.mxu0 0
      %357 = vmatprep.subr.bf16.mxu0 0
      %358 = vmatpush1.bf16.msra.mxu0 0
      %359 = vmatprep.subr.bf16.mxu0 0
      %360 = vmatpush1.bf16.msra.mxu0 0
      %361 = vmatprep.subr.bf16.mxu0 0
      %362 = vmatpush1.bf16.msra.mxu0 0
      %363 = vmatprep.subr.bf16.mxu0 0
      %364 = vmatpush1.bf16.msra.mxu0 0
      %365 = vmatprep.subr.bf16.mxu0 0
      %366 = vmatpush1.bf16.msra.mxu0 0
      %367 = vmatprep.subr.bf16.mxu0 0
      %368 = vmatpush1.bf16.msra.mxu0 0
      %369 = vmatprep.subr.bf16.mxu0 0
      %370 = vmatpush1.bf16.msra.mxu0 0
      %371 = vmatprep.subr.bf16.mxu0 0
      %372 = vmatpush1.bf16.msra.mxu0 0
      %373 = vmatprep.subr.bf16.mxu0 0
      %374 = vmatpush1.bf16.msra.mxu0 0
      %375 = vmatprep.subr.bf16.mxu0 0
      %376 = vmatpush1.bf16.msra.mxu0 0
      %377 = vmatprep.subr.bf16.mxu0 0
      %378 = vmatpush1.bf16.msra.mxu0 0
      %379 = vmatprep.subr.bf16.mxu0 0
      %380 = vmatpush1.bf16.msra.mxu0 0
      %381 = vmatprep.subr.bf16.mxu0 0
      %382 = vmatpush1.bf16.msra.mxu0 0
      %383 = vmatprep.subr.bf16.mxu0 0
      %384 = vmatpush1.bf16.msra.mxu0 0
      %385 = vmatprep.mubr.bf16.mxu0 0
      %386 = vmatmul.mubr.bf16.gmra.mrb[0].mxu0 %v347
      %v387 = vpop.f32.mrb[0].mxu0
      %v388 = vadd.f32 0.0, %v387
      %v389 = vpop.f32.mrb[0].mxu0
      %v390 = vpop.f32.mrb[0].mxu0
      %v391 = vadd.f32 0.0, %v390
      %v392 = vpop.f32.mrb[0].mxu0
      %393 = vdwg.mxu0
      %v394 = vpack.c.bf16 %v391, %v388
      %vm395 = vcmask 261120
      %396 = vst.msk [vmem:[#allocation2] sm:$0xff] %vm395, %v394
      %v397 = vld [vmem:[%s313] sm:$0xff]
      %v398 = vld [vmem:[%s313 + $0x8] sm:$0xff]
      %v399 = vld [vmem:[%s2] sm:$0xf]
      %v400 = vld [vmem:[#allocation2] sm:$0xff]
      %v402 = vsel %vm345, %v400, 0
      %v405 = vsel %vm349, %v399, 0
      %407 = vmatprep.subr.bf16.mxu0 0
      %408 = vmatpush1.bf16.msra.mxu0 %v405
      %409 = vmatprep.subr.bf16.mxu0 0
      %410 = vmatpush1.bf16.msra.mxu0 0
      %411 = vmatprep.subr.bf16.mxu0 0
      %412 = vmatpush1.bf16.msra.mxu0 0
      %413 = vmatprep.subr.bf16.mxu0 0
      %414 = vmatpush1.bf16.msra.mxu0 0
      %415 = vmatprep.subr.bf16.mxu0 0
      %416 = vmatpush1.bf16.msra.mxu0 0
      %417 = vmatprep.subr.bf16.mxu0 0
      %418 = vmatpush1.bf16.msra.mxu0 0
      %419 = vmatprep.subr.bf16.mxu0 0
      %420 = vmatpush1.bf16.msra.mxu0 0
      %421 = vmatprep.subr.bf16.mxu0 0
      %422 = vmatpush1.bf16.msra.mxu0 0
      %423 = vmatprep.subr.bf16.mxu0 0
      %424 = vmatpush1.bf16.msra.mxu0 0
      %425 = vmatprep.subr.bf16.mxu0 0
      %426 = vmatpush1.bf16.msra.mxu0 0
      %427 = vmatprep.subr.bf16.mxu0 0
      %428 = vmatpush1.bf16.msra.mxu0 0
      %429 = vmatprep.subr.bf16.mxu0 0
      %430 = vmatpush1.bf16.msra.mxu0 0
      %431 = vmatprep.subr.bf16.mxu0 0
      %432 = vmatpush1.bf16.msra.mxu0 0
      %433 = vmatprep.subr.bf16.mxu0 0
      %434 = vmatpush1.bf16.msra.mxu0 0
      %435 = vmatprep.subr.bf16.mxu0 0
      %436 = vmatpush1.bf16.msra.mxu0 0
      %437 = vmatprep.subr.bf16.mxu0 0
      %438 = vmatpush1.bf16.msra.mxu0 0
      %439 = vmatprep.mubr.bf16.mxu0 0
      %440 = vmatmul.mubr.bf16.gmra.mrb[0].mxu0 %v402
      %v441 = vpop.f32.mrb[0].mxu0
      %v442 = vadd.f32 0.0, %v441
      %v443 = vpop.f32.mrb[0].mxu0
      %v444 = vpop.f32.mrb[0].mxu0
      %v445 = vadd.f32 0.0, %v444
      %v446 = vpop.f32.mrb[0].mxu0
      %447 = vdwg.mxu0
      %vm448 = vcmp.eq.s32.totalorder %v397, 0
      %vm449 = vcmp.eq.s32.totalorder %v398, 0
      %v450 = vsel %vm448, %v442, 0.0
      %v451 = vsel %vm449, %v445, 0.0
      %453 = vrot.lane.b32.xlu0 %v400, 120
      %v454 = vpop.permute.xlu0 %453
      %v456 = vsel %vm345, %v454, 0
      %458 = vmatprep.subr.bf16.mxu0 0
      %459 = vmatpush1.bf16.msra.mxu0 %v405
      %460 = vmatprep.subr.bf16.mxu0 0
      %461 = vmatpush1.bf16.msra.mxu0 0
      %462 = vmatprep.subr.bf16.mxu0 0
      %463 = vmatpush1.bf16.msra.mxu0 0
      %464 = vmatprep.subr.bf16.mxu0 0
      %465 = vmatpush1.bf16.msra.mxu0 0
      %466 = vmatprep.subr.bf16.mxu0 0
      %467 = vmatpush1.bf16.msra.mxu0 0
      %468 = vmatprep.subr.bf16.mxu0 0
      %469 = vmatpush1.bf16.msra.mxu0 0
      %470 = vmatprep.subr.bf16.mxu0 0
      %471 = vmatpush1.bf16.msra.mxu0 0
      %472 = vmatprep.subr.bf16.mxu0 0
      %473 = vmatpush1.bf16.msra.mxu0 0
      %474 = vmatprep.subr.bf16.mxu0 0
      %475 = vmatpush1.bf16.msra.mxu0 0
      %476 = vmatprep.subr.bf16.mxu0 0
      %477 = vmatpush1.bf16.msra.mxu0 0
      %478 = vmatprep.subr.bf16.mxu0 0
      %479 = vmatpush1.bf16.msra.mxu0 0
      %480 = vmatprep.subr.bf16.mxu0 0
      %481 = vmatpush1.bf16.msra.mxu0 0
      %482 = vmatprep.subr.bf16.mxu0 0
      %483 = vmatpush1.bf16.msra.mxu0 0
      %484 = vmatprep.subr.bf16.mxu0 0
      %485 = vmatpush1.bf16.msra.mxu0 0
      %486 = vmatprep.subr.bf16.mxu0 0
      %487 = vmatpush1.bf16.msra.mxu0 0
      %488 = vmatprep.subr.bf16.mxu0 0
      %489 = vmatpush1.bf16.msra.mxu0 0
      %490 = vmatprep.mubr.bf16.mxu0 0
      %491 = vmatmul.mubr.bf16.gmra.mrb[0].mxu0 %v456
      %v492 = vpop.f32.mrb[0].mxu0
      %v493 = vadd.f32 0.0, %v492
      %v494 = vpop.f32.mrb[0].mxu0
      %v495 = vpop.f32.mrb[0].mxu0
      %v496 = vadd.f32 0.0, %v495
      %v497 = vpop.f32.mrb[0].mxu0
      %498 = vdwg.mxu0
      %v499 = vmax.f32 %v442, %v493
      %v500 = vmax.f32 %v445, %v496
      %v501 = vsub.f32 %v442, %v499
      %v502 = vsub.f32 %v445, %v500
      %v503 = vmul.f32 %v501, 1.442695
      %v504 = vpow.pop %v503
      %v505 = vmul.f32 %v502, 1.442695
      %v506 = vpow.pop %v505
      %v507 = vsub.f32 %v493, %v499
      %v508 = vsub.f32 %v496, %v500
      %v509 = vmul.f32 %v507, 1.442695
      %v510 = vpow.pop %v509
      %v511 = vmul.f32 %v508, 1.442695
      %v512 = vpow.pop %v511
      %v513 = vadd.f32 %v504, %v510
      %v514 = vadd.f32 %v506, %v512
      %vm515 = vcmp.eq.s32.totalorder %v397, 1
      %vm516 = vcmp.eq.s32.totalorder %v398, 1
      %v517 = vsel %vm515, %v493, 0.0
      %v518 = vsel %vm516, %v496, 0.0
      %v519 = vadd.f32 %v450, %v517
      %v520 = vadd.f32 %v451, %v518
      %521 = vrot.lane.b32.xlu0 %v400, 112
      %v522 = vpop.permute.xlu0 %521
      %v524 = vsel %vm345, %v522, 0
      %526 = vmatprep.subr.bf16.mxu0 0
      %527 = vmatpush1.bf16.msra.mxu0 %v405
      %528 = vmatprep.subr.bf16.mxu0 0
      %529 = vmatpush1.bf16.msra.mxu0 0
      %530 = vmatprep.subr.bf16.mxu0 0
      %531 = vmatpush1.bf16.msra.mxu0 0
      %532 = vmatprep.subr.bf16.mxu0 0
      %533 = vmatpush1.bf16.msra.mxu0 0
      %534 = vmatprep.subr.bf16.mxu0 0
      %535 = vmatpush1.bf16.msra.mxu0 0
      %536 = vmatprep.subr.bf16.mxu0 0
      %537 = vmatpush1.bf16.msra.mxu0 0
      %538 = vmatprep.subr.bf16.mxu0 0
      %539 = vmatpush1.bf16.msra.mxu0 0
      %540 = vmatprep.subr.bf16.mxu0 0
      %541 = vmatpush1.bf16.msra.mxu0 0
      %542 = vmatprep.subr.bf16.mxu0 0
      %543 = vmatpush1.bf16.msra.mxu0 0
      %544 = vmatprep.subr.bf16.mxu0 0
      %545 = vmatpush1.bf16.msra.mxu0 0
      %546 = vmatprep.subr.bf16.mxu0 0
      %547 = vmatpush1.bf16.msra.mxu0 0
      %548 = vmatprep.subr.bf16.mxu0 0
      %549 = vmatpush1.bf16.msra.mxu0 0
      %550 = vmatprep.subr.bf16.mxu0 0
      %551 = vmatpush1.bf16.msra.mxu0 0
      %552 = vmatprep.subr.bf16.mxu0 0
      %553 = vmatpush1.bf16.msra.mxu0 0
      %554 = vmatprep.subr.bf16.mxu0 0
      %555 = vmatpush1.bf16.msra.mxu0 0
      %556 = vmatprep.subr.bf16.mxu0 0
      %557 = vmatpush1.bf16.msra.mxu0 0
      %558 = vmatprep.mubr.bf16.mxu0 0
      %559 = vmatmul.mubr.bf16.gmra.mrb[0].mxu0 %v524
      %v560 = vpop.f32.mrb[0].mxu0
      %v561 = vadd.f32 0.0, %v560
      %v562 = vpop.f32.mrb[0].mxu0
      %v563 = vpop.f32.mrb[0].mxu0
      %v564 = vadd.f32 0.0, %v563
      %v565 = vpop.f32.mrb[0].mxu0
      %566 = vdwg.mxu0
      %v567 = vmax.f32 %v499, %v561
      %v568 = vmax.f32 %v500, %v564
      %v569 = vsub.f32 %v499, %v567
      %v570 = vsub.f32 %v500, %v568
      %v571 = vmul.f32 %v569, 1.442695
      %v572 = vpow.pop %v571
      %v573 = vmul.f32 %v570, 1.442695
      %v574 = vpow.pop %v573
      %v575 = vmul.f32 %v513, %v572
      %v576 = vmul.f32 %v514, %v574
      %v577 = vsub.f32 %v561, %v567
      %v578 = vsub.f32 %v564, %v568
      %v579 = vmul.f32 %v577, 1.442695
      %v580 = vpow.pop %v579
      %v581 = vmul.f32 %v578, 1.442695
      %v582 = vpow.pop %v581
      %v583 = vadd.f32 %v575, %v580
      %v584 = vadd.f32 %v576, %v582
      %vm585 = vcmp.eq.s32.totalorder %v397, 2
      %vm586 = vcmp.eq.s32.totalorder %v398, 2
      %v587 = vsel %vm585, %v561, 0.0
      %v588 = vsel %vm586, %v564, 0.0
      %v589 = vadd.f32 %v519, %v587
      %v590 = vadd.f32 %v520, %v588
      %591 = vrot.lane.b32.xlu0 %v400, 104
      %v592 = vpop.permute.xlu0 %591
      %v594 = vsel %vm345, %v592, 0
      %596 = vmatprep.subr.bf16.mxu0 0
      %597 = vmatpush1.bf16.msra.mxu0 %v405
      %598 = vmatprep.subr.bf16.mxu0 0
      %599 = vmatpush1.bf16.msra.mxu0 0
      %600 = vmatprep.subr.bf16.mxu0 0
      %601 = vmatpush1.bf16.msra.mxu0 0
      %602 = vmatprep.subr.bf16.mxu0 0
      %603 = vmatpush1.bf16.msra.mxu0 0
      %604 = vmatprep.subr.bf16.mxu0 0
      %605 = vmatpush1.bf16.msra.mxu0 0
      %606 = vmatprep.subr.bf16.mxu0 0
      %607 = vmatpush1.bf16.msra.mxu0 0
      %608 = vmatprep.subr.bf16.mxu0 0
      %609 = vmatpush1.bf16.msra.mxu0 0
      %610 = vmatprep.subr.bf16.mxu0 0
      %611 = vmatpush1.bf16.msra.mxu0 0
      %612 = vmatprep.subr.bf16.mxu0 0
      %613 = vmatpush1.bf16.msra.mxu0 0
      %614 = vmatprep.subr.bf16.mxu0 0
      %615 = vmatpush1.bf16.msra.mxu0 0
      %616 = vmatprep.subr.bf16.mxu0 0
      %617 = vmatpush1.bf16.msra.mxu0 0
      %618 = vmatprep.subr.bf16.mxu0 0
      %619 = vmatpush1.bf16.msra.mxu0 0
      %620 = vmatprep.subr.bf16.mxu0 0
      %621 = vmatpush1.bf16.msra.mxu0 0
      %622 = vmatprep.subr.bf16.mxu0 0
      %623 = vmatpush1.bf16.msra.mxu0 0
      %624 = vmatprep.subr.bf16.mxu0 0
      %625 = vmatpush1.bf16.msra.mxu0 0
      %626 = vmatprep.subr.bf16.mxu0 0
      %627 = vmatpush1.bf16.msra.mxu0 0
      %628 = vmatprep.mubr.bf16.mxu0 0
      %629 = vmatmul.mubr.bf16.gmra.mrb[0].mxu0 %v594
      %v630 = vpop.f32.mrb[0].mxu0
      %v631 = vadd.f32 0.0, %v630
      %v632 = vpop.f32.mrb[0].mxu0
      %v633 = vpop.f32.mrb[0].mxu0
      %v634 = vadd.f32 0.0, %v633
      %v635 = vpop.f32.mrb[0].mxu0
      %636 = vdwg.mxu0
      %v637 = vmax.f32 %v567, %v631
      %v638 = vmax.f32 %v568, %v634
      %v639 = vsub.f32 %v567, %v637
      %v640 = vsub.f32 %v568, %v638
      %v641 = vmul.f32 %v639, 1.442695
      %v642 = vpow.pop %v641
      %v643 = vmul.f32 %v640, 1.442695
      %v644 = vpow.pop %v643
      %v645 = vmul.f32 %v583, %v642
      %v646 = vmul.f32 %v584, %v644
      %v647 = vsub.f32 %v631, %v637
      %v648 = vsub.f32 %v634, %v638
      %v649 = vmul.f32 %v647, 1.442695
      %v650 = vpow.pop %v649
      %v651 = vmul.f32 %v648, 1.442695
      %v652 = vpow.pop %v651
      %v653 = vadd.f32 %v645, %v650
      %v654 = vadd.f32 %v646, %v652
      %vm655 = vcmp.eq.s32.totalorder %v397, 3
      %vm656 = vcmp.eq.s32.totalorder %v398, 3
      %v657 = vsel %vm655, %v631, 0.0
      %v658 = vsel %vm656, %v634, 0.0
      %v659 = vadd.f32 %v589, %v657
      %v660 = vadd.f32 %v590, %v658
      %v661 = vlog2.pop %v653
      %v662 = vmul.f32 %v661, 0.6931472
      %v663 = vlog2.pop %v654
      %v664 = vmul.f32 %v663, 0.6931472
      %v665 = vadd.f32 %v637, %v662
      %v666 = vadd.f32 %v638, %v664
      %vm667 = vcmp.ge.s32.totalorder %v397, 0
      %vm668 = vcmp.ge.s32.totalorder %v398, 0
      %vm669 = vcmp.lt.s32.totalorder %v397, 4
      %vm670 = vcmp.lt.s32.totalorder %v398, 4
      %vm671 = vmand %vm667, %vm669
      %vm672 = vmand %vm668, %vm670
      %v673 = vsel %vm671, 1, 0
      %v674 = vsel %vm672, 1, 0
      %v675 = vcvt.s32.f32 %v673
      %v676 = vcvt.s32.f32 %v674
      %v677 = vld [vmem:[%s320] sm:$0xff]
      %v678 = vld [vmem:[%s320 + $0x8] sm:$0xff]
      %v679 = vsub.f32 %v665, %v659
      %v680 = vsub.f32 %v666, %v660
      %v681 = vmul.f32 %v675, %v679
      %v682 = vmul.f32 %v676, %v680
      %v683 = vadd.f32 %v677, %v681
      %v684 = vadd.f32 %v678, %v682
      %685 = vst [vmem:[%s320] sm:$0xff] %v683
      %686 = vst [vmem:[%s320 + $0x8] sm:$0xff] %v684
      %v687 = vld [vmem:[%s325] sm:$0xff]
      %v688 = vld [vmem:[%s325 + $0x8] sm:$0xff]
      %v689 = vadd.f32 %v687, %v675
      %v690 = vadd.f32 %v688, %v676
      %691 = vst [vmem:[%s325] sm:$0xff] %v689
      %692 = vst [vmem:[%s325 + $0x8] sm:$0xff] %v690
      %p693 = scmp.lt.s32.totalorder %s22, 1
      %s694 = scalar_select %p693, %s22, 1
      %s695 = smul.addr %s694, 2
      %s696 = smul.addr %s695, 8
      %s697 = scalar_lea.vmem %s4, %s696
      %p698 = scmp.lt.s32.totalorder %s22, 1
      %s699 = scalar_select %p698, %s22, 1
      %s700 = smul.addr %s699, 2
      %s701 = smul.addr %s700, 8
      %s702 = scalar_lea.vmem %s5, %s701
      // Predicated region
      $region41: #{pixel_prototype_ce_loss.3} parent=35 // pred_check
        %p703 = pneg %p159
      $region42: #{pixel_prototype_ce_loss.3} parent=35 // pred_check_branch
        %705 = sbr.rel (%p703) target = $region44
      $region43: #{pixel_prototype_ce_loss.3} parent=35 // pred_region
        _
      $region44: #{pixel_prototype_ce_loss.3} parent=35 // pred_fallthru
        _
      // Predicated region
      $region45: #{pixel_prototype_ce_loss.3} parent=35 // pred_check
        %p706 = pneg %p185
      $region46: #{pixel_prototype_ce_loss.3} parent=35 // pred_check_branch
        %708 = sbr.rel (%p706) target = $region48
      $region47: #{pixel_prototype_ce_loss.3} parent=35 // pred_region
        _
      $region48: #{pixel_prototype_ce_loss.3} parent=35 // pred_fallthru
        _
    $region36: #{pixel_prototype_ce_loss.3} parent=5 // pred_fallthru
      _
    %p709 = scmp.le.s32.totalorder 2, %s12
    // Predicated region
    $region49: #{pixel_prototype_ce_loss.3} parent=5 // pred_check
      %p710 = pneg %p709
    $region50: #{pixel_prototype_ce_loss.3} parent=5 // pred_check_branch
      %712 = sbr.rel (%p710) target = $region52
    $region51: #{pixel_prototype_ce_loss.3} parent=5 // pred_region
      %s713 = ssub.s32 %s12, 2
      // Predicated region
      $region53: #{pixel_prototype_ce_loss.3} parent=51 // pred_check
        %p714 = pneg %p165
      $region54: #{pixel_prototype_ce_loss.3} parent=51 // pred_check_branch
        %716 = sbr.rel (%p714) target = $region56
      $region55: #{pixel_prototype_ce_loss.3} parent=51 // pred_region
        %p717 = scmp.lt.s32.totalorder %s25, 1
        %s718 = scalar_select %p717, %s25, 1
        %s719 = smul.addr %s718, 2
        %s720 = smul.addr %s719, 8
        %s721 = scalar_lea.vmem %s4, %s720
      $region56: #{pixel_prototype_ce_loss.3} parent=51 // pred_fallthru
        _
      // Predicated region
      $region57: #{pixel_prototype_ce_loss.3} parent=51 // pred_check
        %p722 = pneg %p191
      $region58: #{pixel_prototype_ce_loss.3} parent=51 // pred_check_branch
        %724 = sbr.rel (%p722) target = $region60
      $region59: #{pixel_prototype_ce_loss.3} parent=51 // pred_region
        %p725 = scmp.lt.s32.totalorder %s25, 1
        %s726 = scalar_select %p725, %s25, 1
        %s727 = smul.addr %s726, 2
        %s728 = smul.addr %s727, 8
        %s729 = scalar_lea.vmem %s5, %s728
      $region60: #{pixel_prototype_ce_loss.3} parent=51 // pred_fallthru
        _
    $region52: #{pixel_prototype_ce_loss.3} parent=5 // pred_fallthru
      _
  $region6: #{pixel_prototype_ce_loss.3} parent=0 // loop_footer
    %s16 = sadd.s32 1, %s12
  $region7: #{pixel_prototype_ce_loss.3} parent=0 // loop_footer_branch
    %11 = sbr.rel target = $region3
  $region8: #{pixel_prototype_ce_loss.3} parent=0 // loop_exit
    _

// kernel: pixel_prototype_ce_loss.2
$region0: #{pixel_prototype_ce_loss.2}
  #allocation0 [shape = 'u32[]', space=smem, size = 0x4, offset = 0x4, fixed_abs, tag = 'smem constant byte address 0x4 - core index']
  #allocation1 [shape = 'u32[144,128]{1,0:T(1,128)}', space=vmem, size = 0x12000, scoped, tag = 'internal scratch']
  %s0 = inlined_call_operand.vmem [shape: f32[512,16], index: 0, kind: input, shape index: {}]
  %s1 = inlined_call_operand.vmem [shape: s32[1,512], index: 1, kind: input, shape index: {}]
  %s2 = inlined_call_operand.vmem [shape: f32[2,1,256], index: 2, kind: output, shape index: {0}]
  %s3 = inlined_call_operand.vmem [shape: f32[2,1,256], index: 3, kind: output, shape index: {1}]
  %s4 = inlined_call_operand.vmem [shape: f32[2,1,256], index: 4, kind: output, shape index: {2}]
  %5 = xla_tuple %s2, %s3, %s4
  %s6 = sld [smem:[#allocation0]]
  $region61: #{pixel_prototype_ce_loss.2} parent=0
    _
  %s8 = ssub.s32 1, %s6
  %s9 = scalar_select 0, %s8, %s6
  loop: start=0, step=1, limit=4
  $region2: #{pixel_prototype_ce_loss.2} parent=0 // loop_pre_header
    _
  $region3: #{pixel_prototype_ce_loss.2} parent=0 // loop_header
    %s11 = sphi 0, %s15
    %p12 = scmp.ge.s32.totalorder %s11, 4
    %s18 = sphi 0, %s30
    %s19 = sphi 0, %s26
    %s20 = sphi 0, %s18
    %s21 = sphi 0, %s19
    %s22 = sphi 0, %s20
    %s23 = sphi 0, %s21
    %s35 = sphi 0, %s37
    %s38 = sphi 0, %s35
    %s39 = sphi 0, %s38
    %s55 = sphi 0, %s39
    %s63 = sphi 0, %s65
    %s66 = sphi 0, %s63
    %s67 = sphi 0, %s66
    %s83 = sphi 0, %s67
    %s89 = sphi 0, %s91
    %s92 = sphi 0, %s89
    %s93 = sphi 0, %s92
    %s109 = sphi 0, %s93
    %s115 = sphi 0, %s117
    %s118 = sphi 0, %s115
    %s119 = sphi 0, %s118
    %s135 = sphi 0, %s119
    %s141 = sphi 0, %s143
    %s144 = sphi 0, %s141
    %s145 = sphi 0, %s144
    %s161 = sphi 0, %s145
  $region4: #{pixel_prototype_ce_loss.2} parent=0 // loop_header_branch
    %14 = sbr.rel (%p12) target = $region8
  $region5: #{pixel_prototype_ce_loss.2} parent=0 // loop_body
    %s16 = ssub.s32 %s11, 1
    %s17 = ssub.s32 %s11, 2
    %s24 = sadd.s32 1, %s19
    %p25 = scmp.ge.s32.totalorder %s24, 1
    %s26 = scalar_select %p25, 0, %s24
    %s27 = sadd.s32 1, %s18
    %s28 = scalar_select %p25, %s27, %s18
    %p29 = scmp.ge.s32.totalorder %s28, 2
    %s30 = scalar_select %p29, 0, %s28
    %s31 = sadd.s32 %s18, %s19
    %s32 = sadd.s32 %s30, %s26
    %s33 = ssub.s32 %s31, %s32
    %p34 = scmp.eq.s32.totalorder %s33, 0
    %s36 = sadd.s32 %s35, 1
    %s37 = scalar_select %p34, %s35, %s36
    %p40 = pneg %p34
    %p41 = scmp.eq.s32.totalorder %s11, 1
    %p42 = por %p40, %p41
    %p43 = scmp.ne.s32.totalorder %s35, %s38
    %p44 = scmp.eq.s32.totalorder %s11, 0
    %p45 = por %p43, %p44
    %p46 = scmp.ne.s32.totalorder %s35, %s38
    %p47 = scmp.eq.s32.totalorder %s16, 1
    %p48 = por %p46, %p47
    %p49 = scmp.ne.s32.totalorder %s38, %s39
    %p50 = scmp.eq.s32.totalorder %s16, 0
    %p51 = por %p49, %p50
    %p52 = scmp.ne.s32.totalorder %s38, %s39
    %p53 = scmp.eq.s32.totalorder %s17, 1
    %p54 = por %p52, %p53
    %p56 = scmp.ne.s32.totalorder %s39, %s55
    %p57 = scmp.eq.s32.totalorder %s17, 0
    %p58 = por %p56, %p57
    %s59 = sadd.s32 %s18, %s19
    %s60 = sadd.s32 %s30, %s26
    %s61 = ssub.s32 %s59, %s60
    %p62 = scmp.eq.s32.totalorder %s61, 0
    %s64 = sadd.s32 %s63, 1
    %s65 = scalar_select %p62, %s63, %s64
    %p68 = pneg %p62
    %p69 = scmp.eq.s32.totalorder %s11, 1
    %p70 = por %p68, %p69
    %p71 = scmp.ne.s32.totalorder %s63, %s66
    %p72 = scmp.eq.s32.totalorder %s11, 0
    %p73 = por %p71, %p72
    %p74 = scmp.ne.s32.totalorder %s63, %s66
    %p75 = scmp.eq.s32.totalorder %s16, 1
    %p76 = por %p74, %p75
    %p77 = scmp.ne.s32.totalorder %s66, %s67
    %p78 = scmp.eq.s32.totalorder %s16, 0
    %p79 = por %p77, %p78
    %p80 = scmp.ne.s32.totalorder %s66, %s67
    %p81 = scmp.eq.s32.totalorder %s17, 1
    %p82 = por %p80, %p81
    %p84 = scmp.ne.s32.totalorder %s67, %s83
    %p85 = scmp.eq.s32.totalorder %s17, 0
    %p86 = por %p84, %p85
    %s87 = ssub.s32 %s18, %s30
    %p88 = scmp.eq.s32.totalorder %s87, 0
    %s90 = sadd.s32 %s89, 1
    %s91 = scalar_select %p88, %s89, %s90
    %p94 = pneg %p88
    %p95 = scmp.eq.s32.totalorder %s11, 1
    %p96 = por %p94, %p95
    %p97 = scmp.ne.s32.totalorder %s89, %s92
    %p98 = scmp.eq.s32.totalorder %s11, 0
    %p99 = por %p97, %p98
    %p100 = scmp.ne.s32.totalorder %s89, %s92
    %p101 = scmp.eq.s32.totalorder %s16, 1
    %p102 = por %p100, %p101
    %p103 = scmp.ne.s32.totalorder %s92, %s93
    %p104 = scmp.eq.s32.totalorder %s16, 0
    %p105 = por %p103, %p104
    %p106 = scmp.ne.s32.totalorder %s92, %s93
    %p107 = scmp.eq.s32.totalorder %s17, 1
    %p108 = por %p106, %p107
    %p110 = scmp.ne.s32.totalorder %s93, %s109
    %p111 = scmp.eq.s32.totalorder %s17, 0
    %p112 = por %p110, %p111
    %s113 = ssub.s32 %s18, %s30
    %p114 = scmp.eq.s32.totalorder %s113, 0
    %s116 = sadd.s32 %s115, 1
    %s117 = scalar_select %p114, %s115, %s116
    %p120 = pneg %p114
    %p121 = scmp.eq.s32.totalorder %s11, 1
    %p122 = por %p120, %p121
    %p123 = scmp.ne.s32.totalorder %s115, %s118
    %p124 = scmp.eq.s32.totalorder %s11, 0
    %p125 = por %p123, %p124
    %p126 = scmp.ne.s32.totalorder %s115, %s118
    %p127 = scmp.eq.s32.totalorder %s16, 1
    %p128 = por %p126, %p127
    %p129 = scmp.ne.s32.totalorder %s118, %s119
    %p130 = scmp.eq.s32.totalorder %s16, 0
    %p131 = por %p129, %p130
    %p132 = scmp.ne.s32.totalorder %s118, %s119
    %p133 = scmp.eq.s32.totalorder %s17, 1
    %p134 = por %p132, %p133
    %p136 = scmp.ne.s32.totalorder %s119, %s135
    %p137 = scmp.eq.s32.totalorder %s17, 0
    %p138 = por %p136, %p137
    %s139 = ssub.s32 %s18, %s30
    %p140 = scmp.eq.s32.totalorder %s139, 0
    %s142 = sadd.s32 %s141, 1
    %s143 = scalar_select %p140, %s141, %s142
    %p146 = pneg %p140
    %p147 = scmp.eq.s32.totalorder %s11, 1
    %p148 = por %p146, %p147
    %p149 = scmp.ne.s32.totalorder %s141, %s144
    %p150 = scmp.eq.s32.totalorder %s11, 0
    %p151 = por %p149, %p150
    %p152 = scmp.ne.s32.totalorder %s141, %s144
    %p153 = scmp.eq.s32.totalorder %s16, 1
    %p154 = por %p152, %p153
    %p155 = scmp.ne.s32.totalorder %s144, %s145
    %p156 = scmp.eq.s32.totalorder %s16, 0
    %p157 = por %p155, %p156
    %p158 = scmp.ne.s32.totalorder %s144, %s145
    %p159 = scmp.eq.s32.totalorder %s17, 1
    %p160 = por %p158, %p159
    %p162 = scmp.ne.s32.totalorder %s145, %s161
    %p163 = scmp.eq.s32.totalorder %s17, 0
    %p164 = por %p162, %p163
    %p165 = scmp.le.s32.totalorder 1, %s11
    %p166 = scmp.lt.s32.totalorder %s11, 3
    %p167 = pnand %p165, %p166
    %p168 = pneg %p167
    // Predicated region
    $region9: #{pixel_prototype_ce_loss.2} parent=5 // pred_check
      _
    $region10: #{pixel_prototype_ce_loss.2} parent=5 // pred_check_branch
      %170 = sbr.rel (%p167) target = $region12
    $region11: #{pixel_prototype_ce_loss.2} parent=5 // pred_region
      %s171 = ssub.s32 %s11, 1
    $region12: #{pixel_prototype_ce_loss.2} parent=5 // pred_fallthru
      _
    %p172 = scmp.lt.s32.totalorder %s11, 2
    // Predicated region
    $region13: #{pixel_prototype_ce_loss.2} parent=5 // pred_check
      %p173 = pneg %p172
    $region14: #{pixel_prototype_ce_loss.2} parent=5 // pred_check_branch
      %175 = sbr.rel (%p173) target = $region16
    $region15: #{pixel_prototype_ce_loss.2} parent=5 // pred_region
      // Predicated region
      $region17: #{pixel_prototype_ce_loss.2} parent=15 // pred_check
        %p176 = pneg %p45
      $region18: #{pixel_prototype_ce_loss.2} parent=15 // pred_check_branch
        %178 = sbr.rel (%p176) target = $region20
      $region19: #{pixel_prototype_ce_loss.2} parent=15 // pred_region
        %s179 = sadd.s32 %s18, %s19
        %s180 = smul.u32 32, %s179
        %p181 = scmp.lt.s32.totalorder %s180, 63
        %s182 = scalar_select %p181, %s180, 63
        %s183 = smul.addr %s182, 8
        %s184 = scalar_lea.vmem %s0, %s183
        %s185 = sadd.s32 %s18, %s19
        %s186 = smul.u32 32, %s185
      $region20: #{pixel_prototype_ce_loss.2} parent=15 // pred_fallthru
        _
      // Predicated region
      $region21: #{pixel_prototype_ce_loss.2} parent=15 // pred_check
        %p187 = pneg %p73
      $region22: #{pixel_prototype_ce_loss.2} parent=15 // pred_check_branch
        %189 = sbr.rel (%p187) target = $region24
      $region23: #{pixel_prototype_ce_loss.2} parent=15 // pred_region
        %s190 = sadd.s32 %s18, %s19
        %s191 = smul.u32 2, %s190
        %p192 = scmp.lt.s32.totalorder %s191, 3
        %s193 = scalar_select %p192, %s191, 3
        %s194 = scalar_lea.vmem %s1, %s193
        %s195 = sadd.s32 %s18, %s19
        %s196 = smul.u32 2, %s195
      $region24: #{pixel_prototype_ce_loss.2} parent=15 // pred_fallthru
        _
    $region16: #{pixel_prototype_ce_loss.2} parent=5 // pred_fallthru
      _
    %p197 = scmp.le.s32.totalorder 1, %s11
    %p198 = scmp.lt.s32.totalorder %s11, 3
    %p199 = pnand %p197, %p198
    %p200 = pneg %p199
    // Predicated region
    $region25: #{pixel_prototype_ce_loss.2} parent=5 // pred_check
      _
    $region26: #{pixel_prototype_ce_loss.2} parent=5 // pred_check_branch
      %202 = sbr.rel (%p199) target = $region28
    $region27: #{pixel_prototype_ce_loss.2} parent=5 // pred_region
      %s203 = ssub.s32 %s11, 1
      %s204 = sadd.s32 %s20, %s21
      %s205 = smul.u32 32, %s204
      %p206 = scmp.lt.s32.totalorder %s205, 63
      %s207 = scalar_select %p206, %s205, 63
      %s208 = smul.addr %s207, 8
      %s209 = scalar_lea.vmem %s0, %s208
      %p210 = pneg %p51
      %p211 = pneg %p48
      %s212 = sadd.s32 %s20, %s21
      %s213 = smul.u32 2, %s212
      %p214 = scmp.lt.s32.totalorder %s213, 3
      %s215 = scalar_select %p214, %s213, 3
      %s216 = scalar_lea.vmem %s1, %s215
      %p217 = pneg %p79
      %p218 = pneg %p76
      %p219 = pneg %p105
      %p220 = pneg %p102
      %p221 = scmp.lt.s32.totalorder %s20, 1
      %s222 = scalar_select %p221, %s20, 1
      %s223 = smul.addr %s222, 2
      %s224 = scalar_lea.vmem %s2, %s223
      %p225 = pneg %p131
      %p226 = pneg %p128
      %p227 = scmp.lt.s32.totalorder %s20, 1
      %s228 = scalar_select %p227, %s20, 1
      %s229 = smul.addr %s228, 2
      %s230 = scalar_lea.vmem %s3, %s229
      %p231 = pneg %p157
      %p232 = pneg %p154
      %p233 = scmp.lt.s32.totalorder %s20, 1
      %s234 = scalar_select %p233, %s20, 1
      %s235 = smul.addr %s234, 2
      %s236 = scalar_lea.vmem %s4, %s235
      %s237 = sadd.s32 %s20, %s21
      %s238 = smul.u32 32, %s237
      %p239 = scmp.lt.s32.totalorder %s238, 63
      %s240 = scalar_select %p239, %s238, 63
      %s241 = smul.addr %s240, 8
      %s242 = scalar_lea.vmem %s0, %s241
      %s243 = sadd.s32 %s20, %s21
      %s244 = smul.u32 32, %s243
      %s245 = sadd.s32 %s20, %s21
      %s246 = smul.u32 2, %s245
      %p247 = scmp.lt.s32.totalorder %s246, 3
      %s248 = scalar_select %p247, %s246, 3
      %s249 = scalar_lea.vmem %s1, %s248
      %s250 = sadd.s32 %s20, %s21
      %s251 = smul.u32 2, %s250
      %p252 = scmp.lt.s32.totalorder %s20, 1
      %s253 = scalar_select %p252, %s20, 1
      %s254 = smul.addr %s253, 2
      %s255 = scalar_lea.vmem %s2, %s254
      %p256 = scmp.lt.s32.totalorder %s20, 1
      %s257 = scalar_select %p256, %s20, 1
      %s258 = smul.addr %s257, 2
      %s259 = scalar_lea.vmem %s3, %s258
      %p260 = scmp.lt.s32.totalorder %s20, 1
      %s261 = scalar_select %p260, %s20, 1
      %s262 = smul.addr %s261, 2
      %s263 = scalar_lea.vmem %s4, %s262
      %p264 = scmp.eq.s32.totalorder %s21, 0
      // Predicated region
      $region29: #{pixel_prototype_ce_loss.2} parent=27 // pred_check
        %p265 = pneg %p264
      $region30: #{pixel_prototype_ce_loss.2} parent=27 // pred_check_branch
        %267 = sbr.rel (%p265) target = $region32
      $region31: #{pixel_prototype_ce_loss.2} parent=27 // pred_region
        %v268 = vlaneseq
        %vm269 = vcmp.ge.s32.totalorder %v268, 0
        %vm270 = vcmp.lt.s32.totalorder %v268, 256
        %vm271 = vmand %vm269, %vm270
        %272 = vst.msk [vmem:[%s255] sm:$0x3] %vm271, 0.0
        %273 = vst.msk [vmem:[%s259] sm:$0x3] %vm271, 0.0
        %274 = vst.msk [vmem:[%s263] sm:$0x3] %vm271, 0.0
      $region32: #{pixel_prototype_ce_loss.2} parent=27 // pred_fallthru
        _
      %v275 = vlaneseq
      %v276 = vshrl.u32 %v275, 7
      %v277 = vadd.s32 %v276, 8
      %v278 = vlaneseq
      %v279 = vand.u32 %v278, 127
      %vm280 = vcmp.eq.s32.totalorder %v276, %v279
      %vm281 = vcmp.eq.s32.totalorder %v277, %v279
      %v282 = vsel %vm280, 1, 0
      %v283 = vsel %vm281, 1, 0
      %v284 = vcvt.s32.f32 %v282
      %v285 = vcvt.s32.f32 %v283
      %v286 = vld [vmem:[%s242] sm:$0xff]
      %v287 = vld [vmem:[%s242 + $0x8] sm:$0xff]
      %v288 = vld [vmem:[%s242 + $0x10] sm:$0xff]
      %v289 = vld [vmem:[%s242 + $0x18] sm:$0xff]
      %v290 = vld [vmem:[%s242 + $0x20] sm:$0xff]
      %v291 = vld [vmem:[%s242 + $0x28] sm:$0xff]
      %v292 = vld [vmem:[%s242 + $0x30] sm:$0xff]
      %v293 = vld [vmem:[%s242 + $0x38] sm:$0xff]
      %v294 = vld [vmem:[%s242 + $0x40] sm:$0xff]
      %v295 = vld [vmem:[%s242 + $0x48] sm:$0xff]
      %v296 = vld [vmem:[%s242 + $0x50] sm:$0xff]
      %v297 = vld [vmem:[%s242 + $0x58] sm:$0xff]
      %v298 = vld [vmem:[%s242 + $0x60] sm:$0xff]
      %v299 = vld [vmem:[%s242 + $0x68] sm:$0xff]
      %v300 = vld [vmem:[%s242 + $0x70] sm:$0xff]
      %v301 = vld [vmem:[%s242 + $0x78] sm:$0xff]
      %v302 = vld [vmem:[%s242 + $0x80] sm:$0xff]
      %v303 = vld [vmem:[%s242 + $0x88] sm:$0xff]
      %v304 = vld [vmem:[%s242 + $0x90] sm:$0xff]
      %v305 = vld [vmem:[%s242 + $0x98] sm:$0xff]
      %v306 = vld [vmem:[%s242 + $0xa0] sm:$0xff]
      %v307 = vld [vmem:[%s242 + $0xa8] sm:$0xff]
      %v308 = vld [vmem:[%s242 + $0xb0] sm:$0xff]
      %v309 = vld [vmem:[%s242 + $0xb8] sm:$0xff]
      %v310 = vld [vmem:[%s242 + $0xc0] sm:$0xff]
      %v311 = vld [vmem:[%s242 + $0xc8] sm:$0xff]
      %v312 = vld [vmem:[%s242 + $0xd0] sm:$0xff]
      %v313 = vld [vmem:[%s242 + $0xd8] sm:$0xff]
      %v314 = vld [vmem:[%s242 + $0xe0] sm:$0xff]
      %v315 = vld [vmem:[%s242 + $0xe8] sm:$0xff]
      %v316 = vld [vmem:[%s242 + $0xf0] sm:$0xff]
      %v317 = vld [vmem:[%s242 + $0xf8] sm:$0xff]
      %vm318 = vcmask 130048
      %v320 = vsel %vm318, %v284, 0
      %v323 = vsel %vm318, %v285, 0
      %v326 = vsel %vm318, %v286, 0
      %v329 = vsel %vm318, %v287, 0
      %v332 = vsel %vm318, %v288, 0
      %v335 = vsel %vm318, %v289, 0
      %v338 = vsel %vm318, %v290, 0
      %v341 = vsel %vm318, %v291, 0
      %v344 = vsel %vm318, %v292, 0
      %v347 = vsel %vm318, %v293, 0
      %v350 = vsel %vm318, %v294, 0
      %v353 = vsel %vm318, %v295, 0
      %v356 = vsel %vm318, %v296, 0
      %v359 = vsel %vm318, %v297, 0
      %v362 = vsel %vm318, %v298, 0
      %v365 = vsel %vm318, %v299, 0
      %v368 = vsel %vm318, %v300, 0
      %v371 = vsel %vm318, %v301, 0
      %v374 = vsel %vm318, %v302, 0
      %v377 = vsel %vm318, %v303, 0
      %v380 = vsel %vm318, %v304, 0
      %v383 = vsel %vm318, %v305, 0
      %v386 = vsel %vm318, %v306, 0
      %v389 = vsel %vm318, %v307, 0
      %v392 = vsel %vm318, %v308, 0
      %v395 = vsel %vm318, %v309, 0
      %v398 = vsel %vm318, %v310, 0
      %v401 = vsel %vm318, %v311, 0
      %v404 = vsel %vm318, %v312, 0
      %v407 = vsel %vm318, %v313, 0
      %v410 = vsel %vm318, %v314, 0
      %v413 = vsel %vm318, %v315, 0
      %v416 = vsel %vm318, %v316, 0
      %v419 = vsel %vm318, %v317, 0
      %421 = vmatprep.subr.mxu0 0.0
      %422 = vmatpush1.xpose.msra.mxu0 %v326
      %423 = vmatprep.subr.mxu0 0.0
      %424 = vmatpush1.xpose.msra.mxu0 %v329
      %425 = vmatprep.subr.mxu0 0.0
      %426 = vmatpush1.xpose.msra.mxu0 %v332
      %427 = vmatprep.subr.mxu0 0.0
      %428 = vmatpush1.xpose.msra.mxu0 %v335
      %429 = vmatprep.subr.mxu0 0.0
      %430 = vmatpush1.xpose.msra.mxu0 %v338
      %431 = vmatprep.subr.mxu0 0.0
      %432 = vmatpush1.xpose.msra.mxu0 %v341
      %433 = vmatprep.subr.mxu0 0.0
      %434 = vmatpush1.xpose.msra.mxu0 %v344
      %435 = vmatprep.subr.mxu0 0.0
      %436 = vmatpush1.xpose.msra.mxu0 %v347
      %437 = vmatprep.subr.mxu0 0.0
      %438 = vmatpush1.xpose.msra.mxu0 %v350
      %439 = vmatprep.subr.mxu0 0.0
      %440 = vmatpush1.xpose.msra.mxu0 %v353
      %441 = vmatprep.subr.mxu0 0.0
      %442 = vmatpush1.xpose.msra.mxu0 %v356
      %443 = vmatprep.subr.mxu0 0.0
      %444 = vmatpush1.xpose.msra.mxu0 %v359
      %445 = vmatprep.subr.mxu0 0.0
      %446 = vmatpush1.xpose.msra.mxu0 %v362
      %447 = vmatprep.subr.mxu0 0.0
      %448 = vmatpush1.xpose.msra.mxu0 %v365
      %449 = vmatprep.subr.mxu0 0.0
      %450 = vmatpush1.xpose.msra.mxu0 %v368
      %451 = vmatprep.subr.mxu0 0.0
      %452 = vmatpush1.xpose.msra.mxu0 %v371
      %453 = vmatprep.subr.mxu0 0.0
      %454 = vmatpush1.xpose.msra.mxu0 %v374
      %455 = vmatprep.subr.mxu0 0.0
      %456 = vmatpush1.xpose.msra.mxu0 %v377
      %457 = vmatprep.subr.mxu0 0.0
      %458 = vmatpush1.xpose.msra.mxu0 %v380
      %459 = vmatprep.subr.mxu0 0.0
      %460 = vmatpush1.xpose.msra.mxu0 %v383
      %461 = vmatprep.subr.mxu0 0.0
      %462 = vmatpush1.xpose.msra.mxu0 %v386
      %463 = vmatprep.subr.mxu0 0.0
      %464 = vmatpush1.xpose.msra.mxu0 %v389
      %465 = vmatprep.subr.mxu0 0.0
      %466 = vmatpush1.xpose.msra.mxu0 %v392
      %467 = vmatprep.subr.mxu0 0.0
      %468 = vmatpush1.xpose.msra.mxu0 %v395
      %469 = vmatprep.subr.mxu0 0.0
      %470 = vmatpush1.xpose.msra.mxu0 %v398
      %471 = vmatprep.subr.mxu0 0.0
      %472 = vmatpush1.xpose.msra.mxu0 %v401
      %473 = vmatprep.subr.mxu0 0.0
      %474 = vmatpush1.xpose.msra.mxu0 %v404
      %475 = vmatprep.subr.mxu0 0.0
      %476 = vmatpush1.xpose.msra.mxu0 %v407
      %477 = vmatprep.subr.mxu0 0.0
      %478 = vmatpush1.xpose.msra.mxu0 %v410
      %479 = vmatprep.subr.mxu0 0.0
      %480 = vmatpush1.xpose.msra.mxu0 %v413
      %481 = vmatprep.subr.mxu0 0.0
      %482 = vmatpush1.xpose.msra.mxu0 %v416
      %483 = vmatprep.subr.mxu0 0.0
      %484 = vmatpush1.xpose.msra.mxu0 %v419
      %485 = vmatprep.mubr.f32.mxu0 0.0
      %486 = vmatmul.mubr.f32.gmra.mrb[0].mxu0 %v320
      %v487 = vpop.f32.mrb[0].mxu0
      %v488 = vadd.f32 0.0, %v487
      %v489 = vpop.f32.mrb[0].mxu0
      %v490 = vadd.f32 0.0, %v489
      %491 = vmatprep.mubr.f32.mxu0 0.0
      %492 = vmatmul.mubr.f32.gmra.mrb[0].mxu0 %v323
      %v493 = vpop.f32.mrb[0].mxu0
      %v494 = vadd.f32 0.0, %v493
      %v495 = vpop.f32.mrb[0].mxu0
      %v496 = vadd.f32 0.0, %v495
      %497 = vdwg.mxu0
      %v498 = vld [vmem:[%s249] sm:$0x3]
      %vm499 = vcmp.ge.s32.totalorder %v498, 0
      %vm500 = vcmp.lt.s32.totalorder %v498, 16
      %vm501 = vmand %vm499, %vm500
      %v502 = vsel %vm501, 1, 0
      %v503 = vcvt.s32.f32 %v502
      %v504 = vlaneseq
      %v505 = vshrl.u32 %v504, 7
      %v506 = vsub.s32 0, %v505
      %v507 = vrot.slane %v498, %v506
      %v508 = vlaneseq
      %v509 = vshrl.u32 %v508, 7
      %v510 = vsub.s32 1, %v509
      %v511 = vrot.slane %v498, %v510
      %vm512 = vcmp.eq.s32.totalorder %v276, %v507
      %vm513 = vcmp.eq.s32.totalorder %v276, %v511
      %vm514 = vcmp.eq.s32.totalorder %v277, %v507
      %vm515 = vcmp.eq.s32.totalorder %v277, %v511
      %v516 = vsel %vm512, 1, 0
      %v517 = vsel %vm513, 1, 0
      %v518 = vsel %vm514, 1, 0
      %v519 = vsel %vm515, 1, 0
      %v520 = vcvt.s32.f32 %v516
      %v521 = vcvt.s32.f32 %v517
      %v522 = vcvt.s32.f32 %v518
      %v523 = vcvt.s32.f32 %v519
      %v524 = vmul.f32 %v488, %v520
      %v525 = vmul.f32 %v490, %v521
      %v526 = vmul.f32 %v494, %v522
      %v527 = vmul.f32 %v496, %v523
      %v528 = vadd.f32 %v524, %v526
      %v529 = vrot.slane %v528, 4
      %v530 = vadd.f32 %v528, %v529
      %v531 = vrot.slane %v530, 2
      %v532 = vadd.f32 %v530, %v531
      %v533 = vrot.slane %v532, 1
      %v534 = vadd.f32 %v532, %v533
      %v535 = vadd.f32 %v525, %v527
      %v536 = vrot.slane %v535, 4
      %v537 = vadd.f32 %v535, %v536
      %v538 = vrot.slane %v537, 2
      %v539 = vadd.f32 %v537, %v538
      %v540 = vrot.slane %v539, 1
      %v541 = vadd.f32 %v539, %v540
      %v542 = vmax.f32 %v488, %v494
      %v543 = vrot.slane %v542, 4
      %v544 = vmax.f32 %v542, %v543
      %v545 = vrot.slane %v544, 2
      %v546 = vmax.f32 %v544, %v545
      %v547 = vrot.slane %v546, 1
      %v548 = vmax.f32 %v546, %v547
      %v549 = vmax.f32 %v490, %v496
      %v550 = vrot.slane %v549, 4
      %v551 = vmax.f32 %v549, %v550
      %v552 = vrot.slane %v551, 2
      %v553 = vmax.f32 %v551, %v552
      %v554 = vrot.slane %v553, 1
      %v555 = vmax.f32 %v553, %v554
      %v556 = vsub.f32 %v488, %v548
      %v557 = vsub.f32 %v490, %v555
      %v558 = vsub.f32 %v494, %v548
      %v559 = vsub.f32 %v496, %v555
      %v560 = vmul.f32 %v556, 1.442695
      %v561 = vpow.pop %v560
      %v562 = vmul.f32 %v557, 1.442695
      %v563 = vpow.pop %v562
      %v564 = vmul.f32 %v558, 1.442695
      %v565 = vpow.pop %v564
      %v566 = vmul.f32 %v559, 1.442695
      %v567 = vpow.pop %v566
      %v568 = vadd.f32 %v561, %v565
      %v569 = vrot.slane %v568, 4
      %v570 = vadd.f32 %v568, %v569
      %v571 = vrot.slane %v570, 2
      %v572 = vadd.f32 %v570, %v571
      %v573 = vrot.slane %v572, 1
      %v574 = vadd.f32 %v572, %v573
      %v575 = vadd.f32 %v563, %v567
      %v576 = vrot.slane %v575, 4
      %v577 = vadd.f32 %v575, %v576
      %v578 = vrot.slane %v577, 2
      %v579 = vadd.f32 %v577, %v578
      %v580 = vrot.slane %v579, 1
      %v581 = vadd.f32 %v579, %v580
      %v582 = vlog2.pop %v574
      %v583 = vmul.f32 %v582, 0.6931472
      %v584 = vlog2.pop %v581
      %v585 = vmul.f32 %v584, 0.6931472
      %v586 = vadd.f32 %v548, %v583
      %v587 = vadd.f32 %v555, %v585
      %v588 = vld [vmem:[%s255] sm:$0x3]
      %v589 = vsub.f32 %v586, %v534
      %v590 = vsub.f32 %v587, %v541
      %v593 = vcombine.low %v589, %v590
      %v595 = vunpack.c.l.s4 1966171168
      %v596 = vunpack.c.0.s8 %v595
      %v597 = vlaneseq
      %v598 = vshrl.u32 %v597, 7
      %v599 = vsub.s32 %v596, %v598
      %v600 = vrot.slane %v593, %v599
      %v602 = vunpack.c.l.s4 1966171168
      %v603 = vunpack.c.0.s8 %v602
      %v604 = vlaneseq
      %v605 = vshrl.u32 %v604, 7
      %v606 = vsub.s32 %v603, %v605
      %v607 = vrot.slane %v600, %v606
      %v609 = vmul.f32 %v503, %v607
      %v610 = vadd.f32 %v588, %v609
      %v611 = vlaneseq
      %vm612 = vcmp.ge.s32.totalorder %v611, 0
      %vm613 = vcmp.lt.s32.totalorder %v611, 256
      %vm614 = vmand %vm612, %vm613
      %615 = vst.msk [vmem:[%s255] sm:$0x3] %vm614, %v610
      %v616 = vld [vmem:[%s259] sm:$0x3]
      %v617 = vsub.f32 1.0, %v534
      %v618 = vsub.f32 1.0, %v541
      %v619 = vmul.f32 %v617, %v617
      %v620 = vmul.f32 %v618, %v618
      %v623 = vcombine.low %v619, %v620
      %v625 = vunpack.c.l.s4 1966171168
      %v626 = vunpack.c.0.s8 %v625
      %v627 = vlaneseq
      %v628 = vshrl.u32 %v627, 7
      %v629 = vsub.s32 %v626, %v628
      %v630 = vrot.slane %v623, %v629
      %v632 = vunpack.c.l.s4 1966171168
      %v633 = vunpack.c.0.s8 %v632
      %v634 = vlaneseq
      %v635 = vshrl.u32 %v634, 7
      %v636 = vsub.s32 %v633, %v635
      %v637 = vrot.slane %v630, %v636
      %v639 = vmul.f32 %v503, %v637
      %v640 = vadd.f32 %v616, %v639
      %641 = vst.msk [vmem:[%s259] sm:$0x3] %vm614, %v640
      %v642 = vld [vmem:[%s263] sm:$0x3]
      %v643 = vadd.f32 %v642, %v503
      %644 = vst.msk [vmem:[%s263] sm:$0x3] %vm614, %v643
      %p645 = scmp.lt.s32.totalorder %s20, 1
      %s646 = scalar_select %p645, %s20, 1
      %s647 = smul.addr %s646, 2
      %s648 = scalar_lea.vmem %s2, %s647
      %p649 = scmp.lt.s32.totalorder %s20, 1
      %s650 = scalar_select %p649, %s20, 1
      %s651 = smul.addr %s650, 2
      %s652 = scalar_lea.vmem %s3, %s651
      %p653 = scmp.lt.s32.totalorder %s20, 1
      %s654 = scalar_select %p653, %s20, 1
      %s655 = smul.addr %s654, 2
      %s656 = scalar_lea.vmem %s4, %s655
      // Predicated region
      $region33: #{pixel_prototype_ce_loss.2} parent=27 // pred_check
        %p657 = pneg %p102
      $region34: #{pixel_prototype_ce_loss.2} parent=27 // pred_check_branch
        %659 = sbr.rel (%p657) target = $region36
      $region35: #{pixel_prototype_ce_loss.2} parent=27 // pred_region
        _
      $region36: #{pixel_prototype_ce_loss.2} parent=27 // pred_fallthru
        _
      // Predicated region
      $region37: #{pixel_prototype_ce_loss.2} parent=27 // pred_check
        %p660 = pneg %p128
      $region38: #{pixel_prototype_ce_loss.2} parent=27 // pred_check_branch
        %662 = sbr.rel (%p660) target = $region40
      $region39: #{pixel_prototype_ce_loss.2} parent=27 // pred_region
        _
      $region40: #{pixel_prototype_ce_loss.2} parent=27 // pred_fallthru
        _
      // Predicated region
      $region41: #{pixel_prototype_ce_loss.2} parent=27 // pred_check
        %p663 = pneg %p154
      $region42: #{pixel_prototype_ce_loss.2} parent=27 // pred_check_branch
        %665 = sbr.rel (%p663) target = $region44
      $region43: #{pixel_prototype_ce_loss.2} parent=27 // pred_region
        _
      $region44: #{pixel_prototype_ce_loss.2} parent=27 // pred_fallthru
        _
    $region28: #{pixel_prototype_ce_loss.2} parent=5 // pred_fallthru
      _
    %p666 = scmp.le.s32.totalorder 2, %s11
    // Predicated region
    $region45: #{pixel_prototype_ce_loss.2} parent=5 // pred_check
      %p667 = pneg %p666
    $region46: #{pixel_prototype_ce_loss.2} parent=5 // pred_check_branch
      %669 = sbr.rel (%p667) target = $region48
    $region47: #{pixel_prototype_ce_loss.2} parent=5 // pred_region
      %s670 = ssub.s32 %s11, 2
      // Predicated region
      $region49: #{pixel_prototype_ce_loss.2} parent=47 // pred_check
        %p671 = pneg %p108
      $region50: #{pixel_prototype_ce_loss.2} parent=47 // pred_check_branch
        %673 = sbr.rel (%p671) target = $region52
      $region51: #{pixel_prototype_ce_loss.2} parent=47 // pred_region
        %p674 = scmp.lt.s32.totalorder %s22, 1
        %s675 = scalar_select %p674, %s22, 1
        %s676 = smul.addr %s675, 2
        %s677 = scalar_lea.vmem %s2, %s676
      $region52: #{pixel_prototype_ce_loss.2} parent=47 // pred_fallthru
        _
      // Predicated region
      $region53: #{pixel_prototype_ce_loss.2} parent=47 // pred_check
        %p678 = pneg %p134
      $region54: #{pixel_prototype_ce_loss.2} parent=47 // pred_check_branch
        %680 = sbr.rel (%p678) target = $region56
      $region55: #{pixel_prototype_ce_loss.2} parent=47 // pred_region
        %p681 = scmp.lt.s32.totalorder %s22, 1
        %s682 = scalar_select %p681, %s22, 1
        %s683 = smul.addr %s682, 2
        %s684 = scalar_lea.vmem %s3, %s683
      $region56: #{pixel_prototype_ce_loss.2} parent=47 // pred_fallthru
        _
      // Predicated region
      $region57: #{pixel_prototype_ce_loss.2} parent=47 // pred_check
        %p685 = pneg %p160
      $region58: #{pixel_prototype_ce_loss.2} parent=47 // pred_check_branch
        %687 = sbr.rel (%p685) target = $region60
      $region59: #{pixel_prototype_ce_loss.2} parent=47 // pred_region
        %p688 = scmp.lt.s32.totalorder %s22, 1
        %s689 = scalar_select %p688, %s22, 1
        %s690 = smul.addr %s689, 2
        %s691 = scalar_lea.vmem %s4, %s690
      $region60: #{pixel_prototype_ce_loss.2} parent=47 // pred_fallthru
        _
    $region48: #{pixel_prototype_ce_loss.2} parent=5 // pred_fallthru
      _
  $region6: #{pixel_prototype_ce_loss.2} parent=0 // loop_footer
    %s15 = sadd.s32 1, %s11
  $region7: #{pixel_prototype_ce_loss.2} parent=0 // loop_footer_branch
    %10 = sbr.rel target = $region3
  $region8: #{pixel_prototype_ce_loss.2} parent=0 // loop_exit
    _

</llo_original>
